<compile_context>
chip_gen: v6e
topology: v6e:2x2x1
jax: 0.10.0
libtpu: 0.0.40
codegen_flags: <defaults>
</compile_context>

<pallas_src>
import functools
import math

import jax
import jax.numpy as jnp
from jax import lax
from jax.experimental import pallas as pl
from jax.experimental.pallas import tpu as pltpu

EPS = 1e-6
MASK_FILL = -1000000000.0             # matches masked_fill value in the reference
_VMEM_LIMIT_BYTES = 48 * 1024 * 1024  # safe on v7x (64 MiB/TC) and raises v5e/v6e default
_APPROX_RECIP = True                  # set False for tighter allclose vs. torch f32


def _cparams(dimension_semantics):
    return pltpu.CompilerParams(
        dimension_semantics=dimension_semantics,
        vmem_limit_bytes=_VMEM_LIMIT_BYTES,
    )


def _wspec(block_shape, index_map):
    """BlockSpec for a grid-invariant (resident) operand.

    Single-buffered (pl.Buffered(1)) so resident weights are not double-buffered
    — halves their VMEM footprint (critical for v7x's 64 MiB per TC).
    """
    try:
        return pl.BlockSpec(block_shape, index_map, pipeline_mode=pl.Buffered(1))
    except (TypeError, AttributeError, ValueError):
        return pl.BlockSpec(block_shape, index_map)


def _choose_row_tile(m, target=512):
    """Row tile: <= target, multiple of 8 (sublane)."""
    tm = min(target, m)
    return ((tm + 7) // 8) * 8


def _pad_rows(x, tm):
    """Pad rows of [M, D] up to a multiple of tm (keeps the DMA pipeline intact)."""
    m = x.shape[0]
    mp = ((m + tm - 1) // tm) * tm
    if mp != m:
        x = jnp.pad(x, ((0, mp - m), (0, 0)))
    return x


def _ffn_tile(f, target=512):
    """d_ff chunk: divisor of f, multiple of 128 (lane) if possible, else full f."""
    if f <= target:
        return f
    for t in range(target, 127, -128):
        if f % t == 0:
            return t
    return f


def _recip(x):
    return pl.reciprocal(x, approx=_APPROX_RECIP)


# ----------------------------------------------------------------------------
# In-kernel helpers
# ----------------------------------------------------------------------------
def _ln_centered_inv(x):
    """torch-style LayerNorm pieces: (x - mean), 1/(std_unbiased + eps)."""
    d = x.shape[-1]
    mean = jnp.mean(x, axis=-1, keepdims=True)
    xc = x - mean
    var = jnp.sum(xc * xc, axis=-1, keepdims=True) / (d - 1)   # ddof=1 like torch.std
    inv = _recip(jnp.sqrt(var) + EPS)                          # EUP slot
    return xc, inv


# ----------------------------------------------------------------------------
# Kernel B: LayerNorm0 + QKV + multi-head attention + output proj + residual
# (one batch element per grid step; x read once; qkv never hits HBM)
# ----------------------------------------------------------------------------
def _attn_layer_kernel(num_head, x_ref, g_ref, b_ref, wqkv_ref, bqkv_ref,
                       bias_ref, wo_ref, bo_ref, o_ref):
    x = x_ref[0]                                   # [S, D] f32 (residual + LN input)
    S, D = x.shape
    dk = D // num_head

    # --- LayerNorm (torch-style) + fused QKV projection (scale pre-folded) ---
    xc, inv = _ln_centered_inv(x)
    xn = (g_ref[...] * xc * inv + b_ref[...]).astype(jnp.bfloat16)      # [S, D]
    qkv = (jnp.dot(xn, wqkv_ref[...], preferred_element_type=jnp.float32)
           + bqkv_ref[...])                                             # [S, 3D] f32

    # Additive mask broadcast hoisted out of the head loop (no CSE of broadcasts).
    bias_full = jnp.broadcast_to(bias_ref[0], (S, S))                   # [S, S]

    ctx_parts = []
    for h in range(num_head):                      # static unroll over heads
        qh = qkv[:, h * dk:(h + 1) * dk].astype(jnp.bfloat16)           # [S, dk]
        kh = qkv[:, D + h * dk:D + (h + 1) * dk].astype(jnp.bfloat16)   # [S, dk]
        vh = qkv[:, 2 * D + h * dk:2 * D + (h + 1) * dk].astype(jnp.bfloat16)
        # q @ k^T without materialising k.T (contract on dk directly).
        s = lax.dot_general(qh, kh, (((1,), (1,)), ((), ())),
                            preferred_element_type=jnp.float32)         # [S, S]
        s = s + bias_full
        s = s - jnp.max(s, axis=-1, keepdims=True)
        p = jnp.exp(s)
        p = p * _recip(jnp.sum(p, axis=-1, keepdims=True))
        ctx_parts.append(jnp.dot(p.astype(jnp.bfloat16), vh,
                                 preferred_element_type=jnp.float32))   # [S, dk]

    if dk % 128 == 0:
        # Lane-aligned concat -> one full-D contraction keeps the MXU fed.
        ctx = jnp.concatenate(ctx_parts, axis=-1).astype(jnp.bfloat16)  # [S, D]
        proj = jnp.dot(ctx, wo_ref[...], preferred_element_type=jnp.float32)
    else:
        # Small dk: accumulate per-head against static row-slices of Wo
        # (avoids sub-128-lane concat relayouts).
        proj = None
        for h in range(num_head):
            part = jnp.dot(ctx_parts[h].astype(jnp.bfloat16),
                           wo_ref[pl.ds(h * dk, dk), :],
                           preferred_element_type=jnp.float32)          # [S, D]
            proj = part if proj is None else proj + part

    o_ref[0] = x + proj + bo_ref[...]
    # TODO(synk): for long S, add a query-tile grid axis (and flash-style key
    # tiling) so both v7x TensorCores stay fed when B is small/odd.


def attn_block(x, attn_bias, g, b, wqkv_bf16, bqkv, wo_bf16, bo, num_head):
    """out = x + MHA(LayerNorm(x)) @ wo + bo.  x: [B,S,D]; attn_bias: [B,1,S]."""
    B, S, D = x.shape
    N3 = wqkv_bf16.shape[1]
    kernel = functools.partial(_attn_layer_kernel, num_head)
    return pl.pallas_call(
        kernel,
        out_shape=jax.ShapeDtypeStruct((B, S, D), jnp.float32),
        grid=(B,),
        in_specs=[
            pl.BlockSpec((1, S, D), lambda bb: (bb, 0, 0)),     # x (residual + LN in)
            _wspec((1, D), lambda bb: (0, 0)),                  # ln0 gamma
            _wspec((1, D), lambda bb: (0, 0)),                  # ln0 beta
            _wspec((D, N3), lambda bb: (0, 0)),                 # wqkv (bf16, resident)
            _wspec((1, N3), lambda bb: (0, 0)),                 # bqkv (f32)
            pl.BlockSpec((1, 1, S), lambda bb: (bb, 0, 0)),     # additive mask bias
            _wspec((D, D), lambda bb: (0, 0)),                  # wo (bf16, resident)
            _wspec((1, D), lambda bb: (0, 0)),                  # bo (f32)
        ],
        out_specs=pl.BlockSpec((1, S, D), lambda bb: (bb, 0, 0)),
        compiler_params=_cparams(("parallel",)),
    )(x, g.reshape(1, D), b.reshape(1, D), wqkv_bf16, bqkv.reshape(1, N3),
      attn_bias, wo_bf16, bo.reshape(1, D))


# ----------------------------------------------------------------------------
# Kernel C: LayerNorm1 + FFN + residual, d_ff streamed over a reduction axis
# ----------------------------------------------------------------------------
def _ln_ffn_res_kernel(x_ref, g_ref, b_ref, w1_ref, b1_ref, w2_ref, b2_ref,
                       o_ref, xn_sc, acc_sc):
    f = pl.program_id(1)

    @pl.when(f == 0)
    def _():
        x = x_ref[...]                                         # [tm, D] f32
        xc, inv = _ln_centered_inv(x)
        xn_sc[...] = (g_ref[...] * xc * inv + b_ref[...]).astype(jnp.bfloat16)
        acc_sc[...] = jnp.zeros_like(acc_sc)

    hid = (jnp.dot(xn_sc[...], w1_ref[...],
                   preferred_element_type=jnp.float32) + b1_ref[...])   # [tm, tf]
    hid = jnp.maximum(hid, 0.0)                                          # relu (chunk-local)
    acc_sc[...] += jnp.dot(hid.astype(jnp.bfloat16), w2_ref[...],
                           preferred_element_type=jnp.float32)           # [tm, D]

    @pl.when(f == pl.num_programs(1) - 1)
    def _():
        o_ref[...] = x_ref[...] + acc_sc[...] + b2_ref[...]
    # TODO(synk): on v7x, fp8(e4m3) FFN weights with per-channel scales would
    # halve resident weight bytes again; kept bf16 here for portability.


def ln_ffn_res(x, g, b, w1_bf16, b1, w2_bf16, b2):
    """out = x + relu(LayerNorm(x) @ w1 + b1) @ w2 + b2.  x: [M, D]."""
    M0, D = x.shape
    F = w1_bf16.shape[1]
    tm = _choose_row_tile(M0)
    xp = _pad_rows(x, tm)
    Mp = xp.shape[0]
    tf = _ffn_tile(F)
    out = pl.pallas_call(
        _ln_ffn_res_kernel,
        out_shape=jax.ShapeDtypeStruct((Mp, D), jnp.float32),
        grid=(Mp // tm, F // tf),
        in_specs=[
            pl.BlockSpec((tm, D), lambda i, f: (i, 0)),         # x
            _wspec((1, D), lambda i, f: (0, 0)),                # ln1 gamma
            _wspec((1, D), lambda i, f: (0, 0)),                # ln1 beta
            pl.BlockSpec((D, tf), lambda i, f: (0, f)),         # w1 chunk (bf16, streamed)
            pl.BlockSpec((1, tf), lambda i, f: (0, f)),         # b1 chunk
            pl.BlockSpec((tf, D), lambda i, f: (f, 0)),         # w2 chunk (bf16, streamed)
            _wspec((1, D), lambda i, f: (0, 0)),                # b2
        ],
        out_specs=pl.BlockSpec((tm, D), lambda i, f: (i, 0)),
        scratch_shapes=[pltpu.VMEM((tm, D), jnp.bfloat16),      # LN(x) stash (bf16)
                        pltpu.VMEM((tm, D), jnp.float32)],      # FFN accumulator
        compiler_params=_cparams(("parallel", "arbitrary")),
    )(xp, g.reshape(1, D), b.reshape(1, D), w1_bf16, b1.reshape(1, F),
      w2_bf16, b2.reshape(1, D))
    return out[:M0]


# ----------------------------------------------------------------------------
# Final LayerNorm kernel (encoder output norm)
# ----------------------------------------------------------------------------
def _layernorm_kernel(x_ref, g_ref, b_ref, o_ref):
    x = x_ref[...]
    xc, inv = _ln_centered_inv(x)
    o_ref[...] = g_ref[...] * xc * inv + b_ref[...]


def layernorm(x, gamma, beta):
    M0, D = x.shape
    tm = _choose_row_tile(M0)
    xp = _pad_rows(x, tm)
    Mp = xp.shape[0]
    out = pl.pallas_call(
        _layernorm_kernel,
        out_shape=jax.ShapeDtypeStruct((Mp, D), jnp.float32),
        grid=(Mp // tm,),
        in_specs=[
            pl.BlockSpec((tm, D), lambda i: (i, 0)),
            _wspec((1, D), lambda i: (0, 0)),
            _wspec((1, D), lambda i: (0, 0)),
        ],
        out_specs=pl.BlockSpec((tm, D), lambda i: (i, 0)),
        compiler_params=_cparams(("parallel",)),
    )(xp, gamma.reshape(1, D), beta.reshape(1, D))
    return out[:M0]


# ----------------------------------------------------------------------------
# Model orchestration (plain JAX glue around the Pallas kernels)
# ----------------------------------------------------------------------------
def positional_encoding(seq_len, d_model):
    pos = jnp.arange(seq_len, dtype=jnp.float32)[:, None]
    div = jnp.exp(
        jnp.arange(0, d_model, 2, dtype=jnp.float32) * (-math.log(10000.0) / d_model)
    )
    pe = jnp.zeros((seq_len, d_model), dtype=jnp.float32)
    pe = pe.at[:, 0::2].set(jnp.sin(pos * div))
    pe = pe.at[:, 1::2].set(jnp.cos(pos * div))
    return pe


def prepare_params(params):
    """One-time param prep: fold 1/sqrt(dk) into Q; cast matmul weights to bf16."""
    D = params["d_model"]
    H = params["num_head"]
    scale = 1.0 / math.sqrt(D // H)
    fast = {
        "d_model": D,
        "num_head": H,
        "lut": params["lut"],
        "norm_g": params["norm_g"],
        "norm_b": params["norm_b"],
        "layers": [],
    }
    for lp in params["layers"]:
        wqkv = lp["wqkv"].at[:, :D].multiply(scale)   # fold attention scale into Q cols
        bqkv = lp["bqkv"].at[:D].multiply(scale)
        fast["layers"].append({
            "ln0_g": lp["ln0_g"], "ln0_b": lp["ln0_b"],
            "ln1_g": lp["ln1_g"], "ln1_b": lp["ln1_b"],
            "wqkv": wqkv.astype(jnp.bfloat16), "bqkv": bqkv,
            "wo": lp["wo"].astype(jnp.bfloat16), "bo": lp["bo"],
            "w1": lp["w1"].astype(jnp.bfloat16), "b1": lp["b1"],
            "w2": lp["w2"].astype(jnp.bfloat16), "b2": lp["b2"],
        })
    return fast


def doc_embedder_forward(fast_params, token_ids, mask):
    """token_ids: [B, S] int32; mask: [B, 1, 1, S] (1 = keep, 0 = pad)."""
    B, S = token_ids.shape
    D = fast_params["d_model"]
    H = fast_params["num_head"]
    # Embedding lookup + sqrt(d_model) scaling + positional encoding (glue).
    emb = jnp.take(fast_params["lut"], token_ids, axis=0) * math.sqrt(D)
    x = emb + positional_encoding(S, D)[None, :, :]
    # Additive attention bias: 0 where keep, -1e9 where padded (== masked_fill).
    attn_bias = (mask.astype(jnp.float32) - 1.0) * (-MASK_FILL)
    attn_bias = attn_bias.reshape(B, 1, S)
    # TODO(synk): dropout layers are identity in eval mode and are omitted.
    for lp in fast_params["layers"]:
        # sublayer 0: x + self_attention(LayerNorm(x)) — fused kernel B
        x = attn_block(x, attn_bias, lp["ln0_g"], lp["ln0_b"],
                       lp["wqkv"], lp["bqkv"], lp["wo"], lp["bo"], H)
        # sublayer 1: x + FFN(LayerNorm(x)) — kernel C (d_ff streamed)
        y = ln_ffn_res(x.reshape(B * S, D), lp["ln1_g"], lp["ln1_b"],
                       lp["w1"], lp["b1"], lp["w2"], lp["b2"])
        x = y.reshape(B, S, D)
    out = layernorm(x.reshape(B * S, D), fast_params["norm_g"], fast_params["norm_b"])
    return out.reshape(B, S, D)


# ----------------------------------------------------------------------------
# Deterministic parameter initialisation (shapes from the module __init__)
# ----------------------------------------------------------------------------
def init_params(key, *, N, d_model, d_ff, num_head, vocab):
    def dense(k, fan_in, fan_out):
        kw, kb = jax.random.split(k)
        w = jax.random.normal(kw, (fan_in, fan_out), jnp.float32) * 0.02
        b = jax.random.normal(kb, (fan_out,), jnp.float32) * 0.02
        return w, b

    keys = jax.random.split(key, 2 + N)
    params = {
        "d_model": d_model,
        "num_head": num_head,
        "lut": jax.random.normal(keys[0], (vocab, d_model), jnp.float32),
        # final Encoder norm: a_2 = ones, b_2 = ones (as in the reference!)
        "norm_g": jnp.ones((d_model,), jnp.float32),
        "norm_b": jnp.ones((d_model,), jnp.float32),
        "layers": [],
    }
    for layer_idx in range(N):
        lk = jax.random.split(keys[2 + layer_idx], 6)
        wq, bq = dense(lk[0], d_model, d_model)
        wk, bk = dense(lk[1], d_model, d_model)
        wv, bv = dense(lk[2], d_model, d_model)
        wo, bo = dense(lk[3], d_model, d_model)
        w1, b1 = dense(lk[4], d_model, d_ff)
        w2, b2 = dense(lk[5], d_ff, d_model)
        params["layers"].append(
            {
                # fused QKV projection weights: [D, 3D] / [3D]
                "wqkv": jnp.concatenate([wq, wk, wv], axis=1),
                "bqkv": jnp.concatenate([bq, bk, bv], axis=0),
                "wo": wo, "bo": bo,
                "w1": w1, "b1": b1, "w2": w2, "b2": b2,
                "ln0_g": jnp.ones((d_model,), jnp.float32),
                "ln0_b": jnp.ones((d_model,), jnp.float32),
                "ln1_g": jnp.ones((d_model,), jnp.float32),
                "ln1_b": jnp.ones((d_model,), jnp.float32),
            }
        )
    return params


if __name__ == "__main__":
    # Small config consistent with the module: N encoder layers, multi-head attn.
    B, S = 2, 8
    N_LAYERS, D_MODEL, D_FF, NUM_HEAD, VOCAB = 2, 32, 64, 4, 50

    key = jax.random.PRNGKey(0)
    k_param, k_tok = jax.random.split(key)
    params = init_params(
        k_param, N=N_LAYERS, d_model=D_MODEL, d_ff=D_FF, num_head=NUM_HEAD, vocab=VOCAB
    )
    fast_params = prepare_params(params)

    token_ids = jax.random.randint(k_tok, (B, S), 0, VOCAB, dtype=jnp.int32)
    # source mask: 1 = real token, 0 = padding; last two key positions of batch 1 padded.
    mask = jnp.ones((B, 1, 1, S), dtype=jnp.int32)
    mask = mask.at[1, 0, 0, S - 2:].set(0)

    doc_vec = doc_embedder_forward(fast_params, token_ids, mask)
    jax.block_until_ready(doc_vec)
    assert doc_vec.shape == (B, S, D_MODEL)
    assert bool(jnp.all(jnp.isfinite(doc_vec)))
    print("KERNEL_OK")
</pallas_src>

<mosaic_0001>
module attributes {stable_mosaic.version = 11 : i64} {
  func.func @_attn_layer_kernel(%arg0: i32, %arg1: memref<1x8x32xf32, #tpu.memory_space<vmem>>, %arg2: memref<1x32xf32, #tpu.memory_space<vmem>>, %arg3: memref<1x32xf32, #tpu.memory_space<vmem>>, %arg4: memref<32x96xbf16, #tpu.memory_space<vmem>>, %arg5: memref<1x96xf32, #tpu.memory_space<vmem>>, %arg6: memref<1x1x8xf32, #tpu.memory_space<vmem>>, %arg7: memref<32x32xbf16, #tpu.memory_space<vmem>>, %arg8: memref<1x32xf32, #tpu.memory_space<vmem>>, %arg9: memref<1x8x32xf32, #tpu.memory_space<vmem>>) attributes {dimension_semantics = [#tpu.dimension_semantics<parallel>], iteration_bounds = array<i64: 2>, scalar_prefetch = 0 : i64, scratch_operands = 0 : i64, tpu.core_type = #tpu.core_type<tc>, window_params = [{transform_indices = @transform_0, window_bounds = array<i64: 1, 8, 32>}, {pipeline_mode = #tpu.pipeline_mode<synchronous>, transform_indices = @transform_1, window_bounds = array<i64: 1, 32>}, {pipeline_mode = #tpu.pipeline_mode<synchronous>, transform_indices = @transform_2, window_bounds = array<i64: 1, 32>}, {pipeline_mode = #tpu.pipeline_mode<synchronous>, transform_indices = @transform_3, window_bounds = array<i64: 32, 96>}, {pipeline_mode = #tpu.pipeline_mode<synchronous>, transform_indices = @transform_4, window_bounds = array<i64: 1, 96>}, {transform_indices = @transform_5, window_bounds = array<i64: 1, 1, 8>}, {pipeline_mode = #tpu.pipeline_mode<synchronous>, transform_indices = @transform_6, window_bounds = array<i64: 32, 32>}, {pipeline_mode = #tpu.pipeline_mode<synchronous>, transform_indices = @transform_7, window_bounds = array<i64: 1, 32>}, {transform_indices = @transform_8, window_bounds = array<i64: 1, 8, 32>}]} {
    %c0 = arith.constant 0 : index
    %c0_0 = arith.constant 0 : index
    %c0_1 = arith.constant 0 : index
    %0 = vector.load %arg1[%c0, %c0_0, %c0_1] : memref<1x8x32xf32, #tpu.memory_space<vmem>>, vector<1x8x32xf32>
    %1 = vector.shape_cast %0 : vector<1x8x32xf32> to vector<8x32xf32>
    %cst = arith.constant dense<0.000000e+00> : vector<8xf32>
    %2 = vector.multi_reduction <add>, %1, %cst [1] : vector<8x32xf32> to vector<8xf32>
    %3 = vector.shape_cast %2 : vector<8xf32> to vector<8x1xf32>
    %cst_2 = arith.constant 3.200000e+01 : f32
    %4 = vector.broadcast %cst_2 : f32 to vector<8x1xf32>
    %5 = arith.divf %3, %4 : vector<8x1xf32>
    %6 = vector.broadcast %5 : vector<8x1xf32> to vector<8x32xf32>
    %7 = arith.subf %1, %6 : vector<8x32xf32>
    %8 = arith.mulf %7, %7 : vector<8x32xf32>
    %cst_3 = arith.constant dense<0.000000e+00> : vector<8xf32>
    %9 = vector.multi_reduction <add>, %8, %cst_3 [1] : vector<8x32xf32> to vector<8xf32>
    %10 = vector.shape_cast %9 : vector<8xf32> to vector<8x1xf32>
    %cst_4 = arith.constant 3.100000e+01 : f32
    %11 = vector.broadcast %cst_4 : f32 to vector<8x1xf32>
    %12 = arith.divf %10, %11 : vector<8x1xf32>
    %13 = math.sqrt %12 : vector<8x1xf32>
    %cst_5 = arith.constant 9.99999997E-7 : f32
    %14 = vector.broadcast %cst_5 : f32 to vector<8x1xf32>
    %15 = arith.addf %13, %14 : vector<8x1xf32>
    %16 = tpu.reciprocal %15 {approx = true} : vector<8x1xf32> -> vector<8x1xf32>
    %c0_6 = arith.constant 0 : index
    %c0_7 = arith.constant 0 : index
    %17 = vector.load %arg2[%c0_6, %c0_7] : memref<1x32xf32, #tpu.memory_space<vmem>>, vector<1x32xf32>
    %18 = vector.broadcast %17 : vector<1x32xf32> to vector<8x32xf32>
    %19 = arith.mulf %18, %7 : vector<8x32xf32>
    %20 = vector.broadcast %16 : vector<8x1xf32> to vector<8x32xf32>
    %21 = arith.mulf %19, %20 : vector<8x32xf32>
    %c0_8 = arith.constant 0 : index
    %c0_9 = arith.constant 0 : index
    %22 = vector.load %arg3[%c0_8, %c0_9] : memref<1x32xf32, #tpu.memory_space<vmem>>, vector<1x32xf32>
    %23 = vector.broadcast %22 : vector<1x32xf32> to vector<8x32xf32>
    %24 = arith.addf %21, %23 : vector<8x32xf32>
    %25 = arith.truncf %24 : vector<8x32xf32> to vector<8x32xbf16>
    %c0_10 = arith.constant 0 : index
    %c0_11 = arith.constant 0 : index
    %26 = vector.load %arg4[%c0_10, %c0_11] : memref<32x96xbf16, #tpu.memory_space<vmem>>, vector<32x96xbf16>
    %cst_12 = arith.constant dense<0.000000e+00> : vector<8x96xf32>
    %27 = tpu.matmul %25, %26, %cst_12 {dimension_numbers = #tpu.dot_dimension_numbers<[1], [0], [0], [1], [0, 0, 1, 1], [], []>} : vector<8x32xbf16>, vector<32x96xbf16>, vector<8x96xf32> -> vector<8x96xf32>
    %c0_13 = arith.constant 0 : index
    %c0_14 = arith.constant 0 : index
    %28 = vector.load %arg5[%c0_13, %c0_14] : memref<1x96xf32, #tpu.memory_space<vmem>>, vector<1x96xf32>
    %29 = vector.broadcast %28 : vector<1x96xf32> to vector<8x96xf32>
    %30 = arith.addf %27, %29 : vector<8x96xf32>
    %c0_15 = arith.constant 0 : index
    %c0_16 = arith.constant 0 : index
    %c0_17 = arith.constant 0 : index
    %31 = vector.load %arg6[%c0_15, %c0_16, %c0_17] : memref<1x1x8xf32, #tpu.memory_space<vmem>>, vector<1x1x8xf32>
    %32 = vector.shape_cast %31 : vector<1x1x8xf32> to vector<1x8xf32>
    %33 = vector.shape_cast %32 : vector<1x8xf32> to vector<1x8xf32>
    %34 = vector.broadcast %33 : vector<1x8xf32> to vector<8x8xf32>
    %35 = vector.extract_strided_slice %30 {offsets = [0, 0], sizes = [8, 8], strides = [1, 1]} : vector<8x96xf32> to vector<8x8xf32>
    %36 = arith.truncf %35 : vector<8x8xf32> to vector<8x8xbf16>
    %37 = vector.extract_strided_slice %30 {offsets = [0, 32], sizes = [8, 8], strides = [1, 1]} : vector<8x96xf32> to vector<8x8xf32>
    %38 = arith.truncf %37 : vector<8x8xf32> to vector<8x8xbf16>
    %39 = vector.extract_strided_slice %30 {offsets = [0, 64], sizes = [8, 8], strides = [1, 1]} : vector<8x96xf32> to vector<8x8xf32>
    %40 = arith.truncf %39 : vector<8x8xf32> to vector<8x8xbf16>
    %cst_18 = arith.constant dense<0.000000e+00> : vector<8x8xf32>
    %41 = tpu.matmul %36, %38, %cst_18 {dimension_numbers = #tpu.dot_dimension_numbers<[1], [1], [0], [0], [0, 0, 1, 0], [], []>} : vector<8x8xbf16>, vector<8x8xbf16>, vector<8x8xf32> -> vector<8x8xf32>
    %42 = arith.addf %41, %34 : vector<8x8xf32>
    %cst_19 = arith.constant dense<0xFF800000> : vector<8xf32>
    %43 = vector.multi_reduction <maximumf>, %42, %cst_19 [1] : vector<8x8xf32> to vector<8xf32>
    %44 = vector.shape_cast %43 : vector<8xf32> to vector<8x1xf32>
    %45 = vector.broadcast %44 : vector<8x1xf32> to vector<8x8xf32>
    %46 = arith.subf %42, %45 : vector<8x8xf32>
    %47 = math.exp %46 : vector<8x8xf32>
    %cst_20 = arith.constant dense<0.000000e+00> : vector<8xf32>
    %48 = vector.multi_reduction <add>, %47, %cst_20 [1] : vector<8x8xf32> to vector<8xf32>
    %49 = vector.shape_cast %48 : vector<8xf32> to vector<8x1xf32>
    %50 = tpu.reciprocal %49 {approx = true} : vector<8x1xf32> -> vector<8x1xf32>
    %51 = vector.broadcast %50 : vector<8x1xf32> to vector<8x8xf32>
    %52 = arith.mulf %47, %51 : vector<8x8xf32>
    %53 = arith.truncf %52 : vector<8x8xf32> to vector<8x8xbf16>
    %cst_21 = arith.constant dense<0.000000e+00> : vector<8x8xf32>
    %54 = tpu.matmul %53, %40, %cst_21 {dimension_numbers = #tpu.dot_dimension_numbers<[1], [0], [0], [1], [0, 0, 1, 1], [], []>} : vector<8x8xbf16>, vector<8x8xbf16>, vector<8x8xf32> -> vector<8x8xf32>
    %55 = vector.extract_strided_slice %30 {offsets = [0, 8], sizes = [8, 8], strides = [1, 1]} : vector<8x96xf32> to vector<8x8xf32>
    %56 = arith.truncf %55 : vector<8x8xf32> to vector<8x8xbf16>
    %57 = vector.extract_strided_slice %30 {offsets = [0, 40], sizes = [8, 8], strides = [1, 1]} : vector<8x96xf32> to vector<8x8xf32>
    %58 = arith.truncf %57 : vector<8x8xf32> to vector<8x8xbf16>
    %59 = vector.extract_strided_slice %30 {offsets = [0, 72], sizes = [8, 8], strides = [1, 1]} : vector<8x96xf32> to vector<8x8xf32>
    %60 = arith.truncf %59 : vector<8x8xf32> to vector<8x8xbf16>
    %cst_22 = arith.constant dense<0.000000e+00> : vector<8x8xf32>
    %61 = tpu.matmul %56, %58, %cst_22 {dimension_numbers = #tpu.dot_dimension_numbers<[1], [1], [0], [0], [0, 0, 1, 0], [], []>} : vector<8x8xbf16>, vector<8x8xbf16>, vector<8x8xf32> -> vector<8x8xf32>
    %62 = arith.addf %61, %34 : vector<8x8xf32>
    %cst_23 = arith.constant dense<0xFF800000> : vector<8xf32>
    %63 = vector.multi_reduction <maximumf>, %62, %cst_23 [1] : vector<8x8xf32> to vector<8xf32>
    %64 = vector.shape_cast %63 : vector<8xf32> to vector<8x1xf32>
    %65 = vector.broadcast %64 : vector<8x1xf32> to vector<8x8xf32>
    %66 = arith.subf %62, %65 : vector<8x8xf32>
    %67 = math.exp %66 : vector<8x8xf32>
    %cst_24 = arith.constant dense<0.000000e+00> : vector<8xf32>
    %68 = vector.multi_reduction <add>, %67, %cst_24 [1] : vector<8x8xf32> to vector<8xf32>
    %69 = vector.shape_cast %68 : vector<8xf32> to vector<8x1xf32>
    %70 = tpu.reciprocal %69 {approx = true} : vector<8x1xf32> -> vector<8x1xf32>
    %71 = vector.broadcast %70 : vector<8x1xf32> to vector<8x8xf32>
    %72 = arith.mulf %67, %71 : vector<8x8xf32>
    %73 = arith.truncf %72 : vector<8x8xf32> to vector<8x8xbf16>
    %cst_25 = arith.constant dense<0.000000e+00> : vector<8x8xf32>
    %74 = tpu.matmul %73, %60, %cst_25 {dimension_numbers = #tpu.dot_dimension_numbers<[1], [0], [0], [1], [0, 0, 1, 1], [], []>} : vector<8x8xbf16>, vector<8x8xbf16>, vector<8x8xf32> -> vector<8x8xf32>
    %75 = vector.extract_strided_slice %30 {offsets = [0, 16], sizes = [8, 8], strides = [1, 1]} : vector<8x96xf32> to vector<8x8xf32>
    %76 = arith.truncf %75 : vector<8x8xf32> to vector<8x8xbf16>
    %77 = vector.extract_strided_slice %30 {offsets = [0, 48], sizes = [8, 8], strides = [1, 1]} : vector<8x96xf32> to vector<8x8xf32>
    %78 = arith.truncf %77 : vector<8x8xf32> to vector<8x8xbf16>
    %79 = vector.extract_strided_slice %30 {offsets = [0, 80], sizes = [8, 8], strides = [1, 1]} : vector<8x96xf32> to vector<8x8xf32>
    %80 = arith.truncf %79 : vector<8x8xf32> to vector<8x8xbf16>
    %cst_26 = arith.constant dense<0.000000e+00> : vector<8x8xf32>
    %81 = tpu.matmul %76, %78, %cst_26 {dimension_numbers = #tpu.dot_dimension_numbers<[1], [1], [0], [0], [0, 0, 1, 0], [], []>} : vector<8x8xbf16>, vector<8x8xbf16>, vector<8x8xf32> -> vector<8x8xf32>
    %82 = arith.addf %81, %34 : vector<8x8xf32>
    %cst_27 = arith.constant dense<0xFF800000> : vector<8xf32>
    %83 = vector.multi_reduction <maximumf>, %82, %cst_27 [1] : vector<8x8xf32> to vector<8xf32>
    %84 = vector.shape_cast %83 : vector<8xf32> to vector<8x1xf32>
    %85 = vector.broadcast %84 : vector<8x1xf32> to vector<8x8xf32>
    %86 = arith.subf %82, %85 : vector<8x8xf32>
    %87 = math.exp %86 : vector<8x8xf32>
    %cst_28 = arith.constant dense<0.000000e+00> : vector<8xf32>
    %88 = vector.multi_reduction <add>, %87, %cst_28 [1] : vector<8x8xf32> to vector<8xf32>
    %89 = vector.shape_cast %88 : vector<8xf32> to vector<8x1xf32>
    %90 = tpu.reciprocal %89 {approx = true} : vector<8x1xf32> -> vector<8x1xf32>
    %91 = vector.broadcast %90 : vector<8x1xf32> to vector<8x8xf32>
    %92 = arith.mulf %87, %91 : vector<8x8xf32>
    %93 = arith.truncf %92 : vector<8x8xf32> to vector<8x8xbf16>
    %cst_29 = arith.constant dense<0.000000e+00> : vector<8x8xf32>
    %94 = tpu.matmul %93, %80, %cst_29 {dimension_numbers = #tpu.dot_dimension_numbers<[1], [0], [0], [1], [0, 0, 1, 1], [], []>} : vector<8x8xbf16>, vector<8x8xbf16>, vector<8x8xf32> -> vector<8x8xf32>
    %95 = vector.extract_strided_slice %30 {offsets = [0, 24], sizes = [8, 8], strides = [1, 1]} : vector<8x96xf32> to vector<8x8xf32>
    %96 = arith.truncf %95 : vector<8x8xf32> to vector<8x8xbf16>
    %97 = vector.extract_strided_slice %30 {offsets = [0, 56], sizes = [8, 8], strides = [1, 1]} : vector<8x96xf32> to vector<8x8xf32>
    %98 = arith.truncf %97 : vector<8x8xf32> to vector<8x8xbf16>
    %99 = vector.extract_strided_slice %30 {offsets = [0, 88], sizes = [8, 8], strides = [1, 1]} : vector<8x96xf32> to vector<8x8xf32>
    %100 = arith.truncf %99 : vector<8x8xf32> to vector<8x8xbf16>
    %cst_30 = arith.constant dense<0.000000e+00> : vector<8x8xf32>
    %101 = tpu.matmul %96, %98, %cst_30 {dimension_numbers = #tpu.dot_dimension_numbers<[1], [1], [0], [0], [0, 0, 1, 0], [], []>} : vector<8x8xbf16>, vector<8x8xbf16>, vector<8x8xf32> -> vector<8x8xf32>
    %102 = arith.addf %101, %34 : vector<8x8xf32>
    %cst_31 = arith.constant dense<0xFF800000> : vector<8xf32>
    %103 = vector.multi_reduction <maximumf>, %102, %cst_31 [1] : vector<8x8xf32> to vector<8xf32>
    %104 = vector.shape_cast %103 : vector<8xf32> to vector<8x1xf32>
    %105 = vector.broadcast %104 : vector<8x1xf32> to vector<8x8xf32>
    %106 = arith.subf %102, %105 : vector<8x8xf32>
    %107 = math.exp %106 : vector<8x8xf32>
    %cst_32 = arith.constant dense<0.000000e+00> : vector<8xf32>
    %108 = vector.multi_reduction <add>, %107, %cst_32 [1] : vector<8x8xf32> to vector<8xf32>
    %109 = vector.shape_cast %108 : vector<8xf32> to vector<8x1xf32>
    %110 = tpu.reciprocal %109 {approx = true} : vector<8x1xf32> -> vector<8x1xf32>
    %111 = vector.broadcast %110 : vector<8x1xf32> to vector<8x8xf32>
    %112 = arith.mulf %107, %111 : vector<8x8xf32>
    %113 = arith.truncf %112 : vector<8x8xf32> to vector<8x8xbf16>
    %cst_33 = arith.constant dense<0.000000e+00> : vector<8x8xf32>
    %114 = tpu.matmul %113, %100, %cst_33 {dimension_numbers = #tpu.dot_dimension_numbers<[1], [0], [0], [1], [0, 0, 1, 1], [], []>} : vector<8x8xbf16>, vector<8x8xbf16>, vector<8x8xf32> -> vector<8x8xf32>
    %115 = arith.truncf %54 : vector<8x8xf32> to vector<8x8xbf16>
    %c0_34 = arith.constant 0 : index
    %c0_35 = arith.constant 0 : index
    %116 = vector.load %arg7[%c0_34, %c0_35] : memref<32x32xbf16, #tpu.memory_space<vmem>>, vector<8x32xbf16>
    %cst_36 = arith.constant dense<0.000000e+00> : vector<8x32xf32>
    %117 = tpu.matmul %115, %116, %cst_36 {dimension_numbers = #tpu.dot_dimension_numbers<[1], [0], [0], [1], [0, 0, 1, 1], [], []>} : vector<8x8xbf16>, vector<8x32xbf16>, vector<8x32xf32> -> vector<8x32xf32>
    %118 = arith.truncf %74 : vector<8x8xf32> to vector<8x8xbf16>
    %c8 = arith.constant 8 : index
    %c0_37 = arith.constant 0 : index
    %119 = vector.load %arg7[%c8, %c0_37] : memref<32x32xbf16, #tpu.memory_space<vmem>>, vector<8x32xbf16>
    %cst_38 = arith.constant dense<0.000000e+00> : vector<8x32xf32>
    %120 = tpu.matmul %118, %119, %cst_38 {dimension_numbers = #tpu.dot_dimension_numbers<[1], [0], [0], [1], [0, 0, 1, 1], [], []>} : vector<8x8xbf16>, vector<8x32xbf16>, vector<8x32xf32> -> vector<8x32xf32>
    %121 = arith.addf %117, %120 : vector<8x32xf32>
    %122 = arith.truncf %94 : vector<8x8xf32> to vector<8x8xbf16>
    %c16 = arith.constant 16 : index
    %c0_39 = arith.constant 0 : index
    %123 = vector.load %arg7[%c16, %c0_39] : memref<32x32xbf16, #tpu.memory_space<vmem>>, vector<8x32xbf16>
    %cst_40 = arith.constant dense<0.000000e+00> : vector<8x32xf32>
    %124 = tpu.matmul %122, %123, %cst_40 {dimension_numbers = #tpu.dot_dimension_numbers<[1], [0], [0], [1], [0, 0, 1, 1], [], []>} : vector<8x8xbf16>, vector<8x32xbf16>, vector<8x32xf32> -> vector<8x32xf32>
    %125 = arith.addf %121, %124 : vector<8x32xf32>
    %126 = arith.truncf %114 : vector<8x8xf32> to vector<8x8xbf16>
    %c24 = arith.constant 24 : index
    %c0_41 = arith.constant 0 : index
    %127 = vector.load %arg7[%c24, %c0_41] : memref<32x32xbf16, #tpu.memory_space<vmem>>, vector<8x32xbf16>
    %cst_42 = arith.constant dense<0.000000e+00> : vector<8x32xf32>
    %128 = tpu.matmul %126, %127, %cst_42 {dimension_numbers = #tpu.dot_dimension_numbers<[1], [0], [0], [1], [0, 0, 1, 1], [], []>} : vector<8x8xbf16>, vector<8x32xbf16>, vector<8x32xf32> -> vector<8x32xf32>
    %129 = arith.addf %125, %128 : vector<8x32xf32>
    %130 = arith.addf %1, %129 : vector<8x32xf32>
    %c0_43 = arith.constant 0 : index
    %c0_44 = arith.constant 0 : index
    %131 = vector.load %arg8[%c0_43, %c0_44] : memref<1x32xf32, #tpu.memory_space<vmem>>, vector<1x32xf32>
    %132 = vector.broadcast %131 : vector<1x32xf32> to vector<8x32xf32>
    %133 = arith.addf %130, %132 : vector<8x32xf32>
    %c0_45 = arith.constant 0 : index
    %c0_46 = arith.constant 0 : index
    %c0_47 = arith.constant 0 : index
    %134 = vector.load %arg9[%c0_45, %c0_46, %c0_47] : memref<1x8x32xf32, #tpu.memory_space<vmem>>, vector<1x8x32xf32>
    %135 = vector.shape_cast %134 : vector<1x8x32xf32> to vector<8x32xf32>
    %136 = vector.shape_cast %133 : vector<8x32xf32> to vector<1x8x32xf32>
    tpu.vector_store %arg9[%c0_45, %c0_46, %c0_47], %136 {strides = array<i32>} : memref<1x8x32xf32, #tpu.memory_space<vmem>>, vector<1x8x32xf32>,
    return
  }
  func.func @transform_0(%arg0: i32) -> (i32, i32, i32) {
    %c0_i32 = arith.constant 0 : i32
    %c0_i32_0 = arith.constant 0 : i32
    %c0_i32_1 = arith.constant 0 : i32
    return %arg0, %c0_i32, %c0_i32_0 : i32, i32, i32
  }
  func.func @transform_1(%arg0: i32) -> (i32, i32) {
    %c0_i32 = arith.constant 0 : i32
    %c0_i32_0 = arith.constant 0 : i32
    %c0_i32_1 = arith.constant 0 : i32
    return %c0_i32, %c0_i32_0 : i32, i32
  }
  func.func @transform_2(%arg0: i32) -> (i32, i32) {
    %c0_i32 = arith.constant 0 : i32
    %c0_i32_0 = arith.constant 0 : i32
    %c0_i32_1 = arith.constant 0 : i32
    return %c0_i32, %c0_i32_0 : i32, i32
  }
  func.func @transform_3(%arg0: i32) -> (i32, i32) {
    %c0_i32 = arith.constant 0 : i32
    %c0_i32_0 = arith.constant 0 : i32
    %c0_i32_1 = arith.constant 0 : i32
    return %c0_i32, %c0_i32_0 : i32, i32
  }
  func.func @transform_4(%arg0: i32) -> (i32, i32) {
    %c0_i32 = arith.constant 0 : i32
    %c0_i32_0 = arith.constant 0 : i32
    %c0_i32_1 = arith.constant 0 : i32
    return %c0_i32, %c0_i32_0 : i32, i32
  }
  func.func @transform_5(%arg0: i32) -> (i32, i32, i32) {
    %c0_i32 = arith.constant 0 : i32
    %c0_i32_0 = arith.constant 0 : i32
    %c0_i32_1 = arith.constant 0 : i32
    return %arg0, %c0_i32, %c0_i32_0 : i32, i32, i32
  }
  func.func @transform_6(%arg0: i32) -> (i32, i32) {
    %c0_i32 = arith.constant 0 : i32
    %c0_i32_0 = arith.constant 0 : i32
    %c0_i32_1 = arith.constant 0 : i32
    return %c0_i32, %c0_i32_0 : i32, i32
  }
  func.func @transform_7(%arg0: i32) -> (i32, i32) {
    %c0_i32 = arith.constant 0 : i32
    %c0_i32_0 = arith.constant 0 : i32
    %c0_i32_1 = arith.constant 0 : i32
    return %c0_i32, %c0_i32_0 : i32, i32
  }
  func.func @transform_8(%arg0: i32) -> (i32, i32, i32) {
    %c0_i32 = arith.constant 0 : i32
    %c0_i32_0 = arith.constant 0 : i32
    %c0_i32_1 = arith.constant 0 : i32
    return %arg0, %c0_i32, %c0_i32_0 : i32, i32, i32
  }
}

</mosaic_0001>

<llo_original>
// kernel: tpu_custom_call.1
$region0: #{tpu_custom_call.1}
  #allocation0 [shape = 'u32[]', space=smem, size = 0x4, offset = 0x4, fixed_abs, tag = 'smem constant byte address 0x4 - core index']
  #allocation1 [shape = 'u32[144,128]{1,0:T(1,128)}', space=vmem, size = 0x12000, scoped, tag = 'internal scratch']
  %s0 = inlined_call_operand.hbm [shape: f32[2,8,32], index: 0, kind: input, shape index: {}]
  %s1 = inlined_call_operand.vmem [shape: f32[1,32], index: 1, kind: input, shape index: {}]
  %s2 = inlined_call_operand.hbm [shape: f32[1,32], index: 2, kind: input, shape index: {}]
  %s3 = inlined_call_operand.hbm [shape: bf16[32,96], index: 3, kind: input, shape index: {}]
  %s4 = inlined_call_operand.vmem [shape: f32[1,96], index: 4, kind: input, shape index: {}]
  %s5 = inlined_call_operand.vmem [shape: f32[2,1,8], index: 5, kind: input, shape index: {}]
  %s6 = inlined_call_operand.hbm [shape: bf16[32,32], index: 6, kind: input, shape index: {}]
  %s7 = inlined_call_operand.vmem [shape: f32[1,32], index: 7, kind: input, shape index: {}]
  %s8 = inlined_call_operand.hbm [shape: f32[2,8,32], index: 8, kind: output, shape index: {}]
  %s9 = sld [smem:[#allocation0]]
  $region81: #{tpu_custom_call.1} parent=0
    _
  %s11 = ssub.s32 1, %s9
  %s12 = scalar_select 0, %s11, %s9
  $region1: #{tpu_custom_call.1} parent=0
    #allocation2 [shape = 'u8[8192]{0}', space=vmem, size = 0x2000, scoped, tag = 'input window, operand 0']
    #allocation3 [shape = 's32[2]{0}', space=sflag, size = 0x8, scoped, tag = 'scoped memory for tpu_custom_call.1']
    #allocation4 [shape = 's32[2]{0}', space=sflag, size = 0x8, scoped, tag = 'scoped memory for tpu_custom_call.1']
    #allocation5 [shape = 'u8[512]{0}', space=vmem, size = 0x400, scoped, tag = 'input window, operand 2, single buffered']
    #allocation6 [shape = 's32[1]{0}', space=sflag, size = 0x4, scoped, tag = 'scoped memory for tpu_custom_call.1']
    #allocation7 [shape = 'u8[8192]{0}', space=vmem, size = 0x2000, scoped, tag = 'input window, operand 3, single buffered']
    #allocation8 [shape = 'u8[8192]{0}', space=vmem, size = 0x2000, scoped, tag = 'input window, operand 6, single buffered']
    #allocation9 [shape = 's32[1]{0}', space=sflag, size = 0x4, scoped, tag = 'scoped memory for tpu_custom_call.1']
    #allocation10 [shape = 'u8[8192]{0}', space=vmem, size = 0x2000, scoped, tag = 'output window, operand 0']
    %13 = vsyncpa [#allocation3], 0
    %s14 = scalar_lea.sflag [#allocation3], 1
    %15 = vsyncpa %s14, 0
    %16 = vsyncpa [#allocation6], 0
    %17 = vsyncpa [#allocation9], 0
    %18 = vsyncpa [#allocation4], 0
    %s19 = scalar_lea.sflag [#allocation4], 1
    %20 = vsyncpa %s19, 0
    loop: start=0, step=1, limit=4
    $region2: #{tpu_custom_call.1} parent=1 // loop_pre_header
      _
    $region3: #{tpu_custom_call.1} parent=1 // loop_header
      %s22 = sphi 0, %s26
      %p23 = scmp.ge.s32.totalorder %s22, 4
      %s32 = sphi 0, %s34
      %s35 = sphi 0, %s32
      %s36 = sphi 0, %s35
      %s52 = sphi 0, %s36
      %s56 = sphi 0, %s56
      %s58 = sphi 0, %s56
      %s59 = sphi 0, %s58
      %s73 = sphi 0, %s59
      %s77 = sphi 0, %s77
      %s79 = sphi 0, %s77
      %s80 = sphi 0, %s79
      %s94 = sphi 0, %s80
      %s98 = sphi 0, %s98
      %s100 = sphi 0, %s98
      %s101 = sphi 0, %s100
      %s115 = sphi 0, %s101
      %s119 = sphi 0, %s119
      %s121 = sphi 0, %s119
      %s122 = sphi 0, %s121
      %s136 = sphi 0, %s122
      %s142 = sphi 0, %s144
      %s145 = sphi 0, %s142
      %s146 = sphi 0, %s145
      %s162 = sphi 0, %s146
      %s166 = sphi 0, %s166
      %s168 = sphi 0, %s166
      %s169 = sphi 0, %s168
      %s183 = sphi 0, %s169
      %s187 = sphi 0, %s187
      %s189 = sphi 0, %s187
      %s190 = sphi 0, %s189
      %s204 = sphi 0, %s190
      %s210 = sphi 0, %s212
      %s213 = sphi 0, %s210
      %s214 = sphi 0, %s213
      %s230 = sphi 0, %s214
    $region4: #{tpu_custom_call.1} parent=1 // loop_header_branch
      %25 = sbr.rel (%p23) target = $region8
    $region5: #{tpu_custom_call.1} parent=1 // loop_body
      %s27 = ssub.s32 %s22, 1
      %s28 = ssub.s32 %s22, 2
      %s29 = sadd.s32 %s22, 1
      %s30 = ssub.s32 %s22, %s29
      %p31 = scmp.eq.s32.totalorder %s30, 0
      %s33 = sadd.s32 %s32, 1
      %s34 = scalar_select %p31, %s32, %s33
      %p37 = pneg %p31
      %p38 = scmp.eq.s32.totalorder %s22, 1
      %p39 = por %p37, %p38
      %p40 = scmp.ne.s32.totalorder %s32, %s35
      %p41 = scmp.eq.s32.totalorder %s22, 0
      %p42 = por %p40, %p41
      %p43 = scmp.ne.s32.totalorder %s32, %s35
      %p44 = scmp.eq.s32.totalorder %s27, 1
      %p45 = por %p43, %p44
      %p46 = scmp.ne.s32.totalorder %s35, %s36
      %p47 = scmp.eq.s32.totalorder %s27, 0
      %p48 = por %p46, %p47
      %p49 = scmp.ne.s32.totalorder %s35, %s36
      %p50 = scmp.eq.s32.totalorder %s28, 1
      %p51 = por %p49, %p50
      %p53 = scmp.ne.s32.totalorder %s36, %s52
      %p54 = scmp.eq.s32.totalorder %s28, 0
      %p55 = por %p53, %p54
      %s57 = sadd.s32 %s56, 1
      %p60 = scmp.eq.s32.totalorder %s22, 1
      %p61 = scmp.ne.s32.totalorder %s56, %s58
      %p62 = scmp.eq.s32.totalorder %s22, 0
      %p63 = por %p61, %p62
      %p64 = scmp.ne.s32.totalorder %s56, %s58
      %p65 = scmp.eq.s32.totalorder %s27, 1
      %p66 = por %p64, %p65
      %p67 = scmp.ne.s32.totalorder %s58, %s59
      %p68 = scmp.eq.s32.totalorder %s27, 0
      %p69 = por %p67, %p68
      %p70 = scmp.ne.s32.totalorder %s58, %s59
      %p71 = scmp.eq.s32.totalorder %s28, 1
      %p72 = por %p70, %p71
      %p74 = scmp.ne.s32.totalorder %s59, %s73
      %p75 = scmp.eq.s32.totalorder %s28, 0
      %p76 = por %p74, %p75
      %s78 = sadd.s32 %s77, 1
      %p81 = scmp.eq.s32.totalorder %s22, 1
      %p82 = scmp.ne.s32.totalorder %s77, %s79
      %p83 = scmp.eq.s32.totalorder %s22, 0
      %p84 = por %p82, %p83
      %p85 = scmp.ne.s32.totalorder %s77, %s79
      %p86 = scmp.eq.s32.totalorder %s27, 1
      %p87 = por %p85, %p86
      %p88 = scmp.ne.s32.totalorder %s79, %s80
      %p89 = scmp.eq.s32.totalorder %s27, 0
      %p90 = por %p88, %p89
      %p91 = scmp.ne.s32.totalorder %s79, %s80
      %p92 = scmp.eq.s32.totalorder %s28, 1
      %p93 = por %p91, %p92
      %p95 = scmp.ne.s32.totalorder %s80, %s94
      %p96 = scmp.eq.s32.totalorder %s28, 0
      %p97 = por %p95, %p96
      %s99 = sadd.s32 %s98, 1
      %p102 = scmp.eq.s32.totalorder %s22, 1
      %p103 = scmp.ne.s32.totalorder %s98, %s100
      %p104 = scmp.eq.s32.totalorder %s22, 0
      %p105 = por %p103, %p104
      %p106 = scmp.ne.s32.totalorder %s98, %s100
      %p107 = scmp.eq.s32.totalorder %s27, 1
      %p108 = por %p106, %p107
      %p109 = scmp.ne.s32.totalorder %s100, %s101
      %p110 = scmp.eq.s32.totalorder %s27, 0
      %p111 = por %p109, %p110
      %p112 = scmp.ne.s32.totalorder %s100, %s101
      %p113 = scmp.eq.s32.totalorder %s28, 1
      %p114 = por %p112, %p113
      %p116 = scmp.ne.s32.totalorder %s101, %s115
      %p117 = scmp.eq.s32.totalorder %s28, 0
      %p118 = por %p116, %p117
      %s120 = sadd.s32 %s119, 1
      %p123 = scmp.eq.s32.totalorder %s22, 1
      %p124 = scmp.ne.s32.totalorder %s119, %s121
      %p125 = scmp.eq.s32.totalorder %s22, 0
      %p126 = por %p124, %p125
      %p127 = scmp.ne.s32.totalorder %s119, %s121
      %p128 = scmp.eq.s32.totalorder %s27, 1
      %p129 = por %p127, %p128
      %p130 = scmp.ne.s32.totalorder %s121, %s122
      %p131 = scmp.eq.s32.totalorder %s27, 0
      %p132 = por %p130, %p131
      %p133 = scmp.ne.s32.totalorder %s121, %s122
      %p134 = scmp.eq.s32.totalorder %s28, 1
      %p135 = por %p133, %p134
      %p137 = scmp.ne.s32.totalorder %s122, %s136
      %p138 = scmp.eq.s32.totalorder %s28, 0
      %p139 = por %p137, %p138
      %s140 = ssub.s32 %s22, %s29
      %p141 = scmp.eq.s32.totalorder %s140, 0
      %s143 = sadd.s32 %s142, 1
      %s144 = scalar_select %p141, %s142, %s143
      %p147 = pneg %p141
      %p148 = scmp.eq.s32.totalorder %s22, 1
      %p149 = por %p147, %p148
      %p150 = scmp.ne.s32.totalorder %s142, %s145
      %p151 = scmp.eq.s32.totalorder %s22, 0
      %p152 = por %p150, %p151
      %p153 = scmp.ne.s32.totalorder %s142, %s145
      %p154 = scmp.eq.s32.totalorder %s27, 1
      %p155 = por %p153, %p154
      %p156 = scmp.ne.s32.totalorder %s145, %s146
      %p157 = scmp.eq.s32.totalorder %s27, 0
      %p158 = por %p156, %p157
      %p159 = scmp.ne.s32.totalorder %s145, %s146
      %p160 = scmp.eq.s32.totalorder %s28, 1
      %p161 = por %p159, %p160
      %p163 = scmp.ne.s32.totalorder %s146, %s162
      %p164 = scmp.eq.s32.totalorder %s28, 0
      %p165 = por %p163, %p164
      %s167 = sadd.s32 %s166, 1
      %p170 = scmp.eq.s32.totalorder %s22, 1
      %p171 = scmp.ne.s32.totalorder %s166, %s168
      %p172 = scmp.eq.s32.totalorder %s22, 0
      %p173 = por %p171, %p172
      %p174 = scmp.ne.s32.totalorder %s166, %s168
      %p175 = scmp.eq.s32.totalorder %s27, 1
      %p176 = por %p174, %p175
      %p177 = scmp.ne.s32.totalorder %s168, %s169
      %p178 = scmp.eq.s32.totalorder %s27, 0
      %p179 = por %p177, %p178
      %p180 = scmp.ne.s32.totalorder %s168, %s169
      %p181 = scmp.eq.s32.totalorder %s28, 1
      %p182 = por %p180, %p181
      %p184 = scmp.ne.s32.totalorder %s169, %s183
      %p185 = scmp.eq.s32.totalorder %s28, 0
      %p186 = por %p184, %p185
      %s188 = sadd.s32 %s187, 1
      %p191 = scmp.eq.s32.totalorder %s22, 1
      %p192 = scmp.ne.s32.totalorder %s187, %s189
      %p193 = scmp.eq.s32.totalorder %s22, 0
      %p194 = por %p192, %p193
      %p195 = scmp.ne.s32.totalorder %s187, %s189
      %p196 = scmp.eq.s32.totalorder %s27, 1
      %p197 = por %p195, %p196
      %p198 = scmp.ne.s32.totalorder %s189, %s190
      %p199 = scmp.eq.s32.totalorder %s27, 0
      %p200 = por %p198, %p199
      %p201 = scmp.ne.s32.totalorder %s189, %s190
      %p202 = scmp.eq.s32.totalorder %s28, 1
      %p203 = por %p201, %p202
      %p205 = scmp.ne.s32.totalorder %s190, %s204
      %p206 = scmp.eq.s32.totalorder %s28, 0
      %p207 = por %p205, %p206
      %s208 = ssub.s32 %s22, %s29
      %p209 = scmp.eq.s32.totalorder %s208, 0
      %s211 = sadd.s32 %s210, 1
      %s212 = scalar_select %p209, %s210, %s211
      %p215 = pneg %p209
      %p216 = scmp.eq.s32.totalorder %s22, 1
      %p217 = por %p215, %p216
      %p218 = scmp.ne.s32.totalorder %s210, %s213
      %p219 = scmp.eq.s32.totalorder %s22, 0
      %p220 = por %p218, %p219
      %p221 = scmp.ne.s32.totalorder %s210, %s213
      %p222 = scmp.eq.s32.totalorder %s27, 1
      %p223 = por %p221, %p222
      %p224 = scmp.ne.s32.totalorder %s213, %s214
      %p225 = scmp.eq.s32.totalorder %s27, 0
      %p226 = por %p224, %p225
      %p227 = scmp.ne.s32.totalorder %s213, %s214
      %p228 = scmp.eq.s32.totalorder %s28, 1
      %p229 = por %p227, %p228
      %p231 = scmp.ne.s32.totalorder %s214, %s230
      %p232 = scmp.eq.s32.totalorder %s28, 0
      %p233 = por %p231, %p232
      %p234 = scmp.le.s32.totalorder 1, %s22
      %p235 = scmp.lt.s32.totalorder %s22, 3
      %p236 = pnand %p234, %p235
      %p237 = pneg %p236
      // Predicated region
      $region9: #{tpu_custom_call.1} parent=5 // pred_check
        _
      $region10: #{tpu_custom_call.1} parent=5 // pred_check_branch
        %239 = sbr.rel (%p236) target = $region12
      $region11: #{tpu_custom_call.1} parent=5 // pred_region
        %s240 = ssub.s32 %s22, 1
        // Predicated region
        $region13: #{tpu_custom_call.1} parent=11 // pred_check
          %p241 = pneg %p69
        $region14: #{tpu_custom_call.1} parent=11 // pred_check_branch
          %243 = sbr.rel (%p241) target = $region16
        $region15: #{tpu_custom_call.1} parent=11 // pred_region
          _
        $region16: #{tpu_custom_call.1} parent=11 // pred_fallthru
          _
        // Predicated region
        $region17: #{tpu_custom_call.1} parent=11 // pred_check
          %p244 = pneg %p90
        $region18: #{tpu_custom_call.1} parent=11 // pred_check_branch
          %246 = sbr.rel (%p244) target = $region20
        $region19: #{tpu_custom_call.1} parent=11 // pred_region
          %s248 = ssub.s32 16, 16
          %249 = vsyncadd [#allocation6], %s248
          %s251 = sshll.u32 [#allocation5], 4
          %s252 = int_to_ptr.vmem [resolvable:$true] %s251
          %254 = dma.hbm_to_vmem [thread:$0]  %s2, 16, %s252, [#allocation6]
        $region20: #{tpu_custom_call.1} parent=11 // pred_fallthru
          _
        // Predicated region
        $region21: #{tpu_custom_call.1} parent=11 // pred_check
          %p255 = pneg %p111
        $region22: #{tpu_custom_call.1} parent=11 // pred_check_branch
          %257 = sbr.rel (%p255) target = $region24
        $region23: #{tpu_custom_call.1} parent=11 // pred_region
          %s259 = ssub.s32 256, 256
          %260 = vsyncadd [#allocation6], %s259
          %s261 = sshll.u32 [#allocation7], 4
          %s262 = int_to_ptr.vmem [resolvable:$true] %s261
          %267 = dma.hbm_to_vmem [thread:$0]  %s3, 256, %s262, [#allocation6], 64, 64, 4
        $region24: #{tpu_custom_call.1} parent=11 // pred_fallthru
          _
        // Predicated region
        $region25: #{tpu_custom_call.1} parent=11 // pred_check
          %p268 = pneg %p132
        $region26: #{tpu_custom_call.1} parent=11 // pred_check_branch
          %270 = sbr.rel (%p268) target = $region28
        $region27: #{tpu_custom_call.1} parent=11 // pred_region
          _
        $region28: #{tpu_custom_call.1} parent=11 // pred_fallthru
          _
        // Predicated region
        $region29: #{tpu_custom_call.1} parent=11 // pred_check
          %p271 = pneg %p179
        $region30: #{tpu_custom_call.1} parent=11 // pred_check_branch
          %273 = sbr.rel (%p271) target = $region32
        $region31: #{tpu_custom_call.1} parent=11 // pred_region
          %s275 = ssub.s32 256, 256
          %276 = vsyncadd [#allocation9], %s275
          %s277 = sshll.u32 [#allocation8], 4
          %s278 = int_to_ptr.vmem [resolvable:$true] %s277
          %283 = dma.hbm_to_vmem [thread:$0]  %s6, 256, %s278, [#allocation9], 64, 64, 4
        $region32: #{tpu_custom_call.1} parent=11 // pred_fallthru
          _
        // Predicated region
        $region33: #{tpu_custom_call.1} parent=11 // pred_check
          %p284 = pneg %p200
        $region34: #{tpu_custom_call.1} parent=11 // pred_check_branch
          %286 = sbr.rel (%p284) target = $region36
        $region35: #{tpu_custom_call.1} parent=11 // pred_region
          _
        $region36: #{tpu_custom_call.1} parent=11 // pred_fallthru
          _
      $region12: #{tpu_custom_call.1} parent=5 // pred_fallthru
        _
      %p287 = scmp.lt.s32.totalorder %s22, 2
      // Predicated region
      $region37: #{tpu_custom_call.1} parent=5 // pred_check
        %p288 = pneg %p287
      $region38: #{tpu_custom_call.1} parent=5 // pred_check_branch
        %290 = sbr.rel (%p288) target = $region40
      $region39: #{tpu_custom_call.1} parent=5 // pred_region
        // Predicated region
        $region41: #{tpu_custom_call.1} parent=39 // pred_check
          %p291 = pneg %p42
        $region42: #{tpu_custom_call.1} parent=39 // pred_check_branch
          %293 = sbr.rel (%p291) target = $region44
        $region43: #{tpu_custom_call.1} parent=39 // pred_region
          %s294 = sand.u32 %s32, 1
          %s295 = scalar_lea.sflag [#allocation3], %s294
          %s296 = sand.u32 %s32, 1
          %s297 = smul.addr %s296, 8
          %s298 = scalar_lea.vmem [#allocation2], %s297
          %s300 = ssub.s32 128, 128
          %301 = vsyncadd %s295, %s300
          %s302 = smul.addr %s22, 128
          %s303 = scalar_lea.hbm %s0, %s302
          %s305 = sshll.u32 %s298, 4
          %s306 = int_to_ptr.vmem [resolvable:$true] %s305
          %308 = dma.hbm_to_vmem [thread:$0]  %s303, 128, %s306, %s295
        $region44: #{tpu_custom_call.1} parent=39 // pred_fallthru
          _
        // Predicated region
        $region45: #{tpu_custom_call.1} parent=39 // pred_check
          %p309 = pneg %p152
        $region46: #{tpu_custom_call.1} parent=39 // pred_check_branch
          %311 = sbr.rel (%p309) target = $region48
        $region47: #{tpu_custom_call.1} parent=39 // pred_region
          %p312 = scmp.lt.s32.totalorder %s22, 1
          %s313 = scalar_select %p312, %s22, 1
          %s314 = scalar_lea.vmem %s5, %s313
        $region48: #{tpu_custom_call.1} parent=39 // pred_fallthru
          _
      $region40: #{tpu_custom_call.1} parent=5 // pred_fallthru
        _
      %p315 = scmp.le.s32.totalorder 1, %s22
      %p316 = scmp.lt.s32.totalorder %s22, 3
      %p317 = pnand %p315, %p316
      %p318 = pneg %p317
      // Predicated region
      $region49: #{tpu_custom_call.1} parent=5 // pred_check
        _
      $region50: #{tpu_custom_call.1} parent=5 // pred_check_branch
        %320 = sbr.rel (%p317) target = $region52
      $region51: #{tpu_custom_call.1} parent=5 // pred_region
        %s321 = ssub.s32 %s22, 1
        %s322 = sand.u32 %s35, 1
        %s323 = scalar_lea.sflag [#allocation3], %s322
        %s324 = sand.u32 %s35, 1
        %s325 = smul.addr %s324, 8
        %s326 = scalar_lea.vmem [#allocation2], %s325
        // Predicated region
        $region53: #{tpu_custom_call.1} parent=51 // pred_check
          %p327 = pneg %p48
        $region54: #{tpu_custom_call.1} parent=51 // pred_check_branch
          %329 = sbr.rel (%p327) target = $region56
        $region55: #{tpu_custom_call.1} parent=51 // pred_region
          %330 = dma.done %s323, 128
        $region56: #{tpu_custom_call.1} parent=51 // pred_fallthru
          _
        // Predicated region
        $region57: #{tpu_custom_call.1} parent=51 // pred_check
          %p331 = pneg %p90
        $region58: #{tpu_custom_call.1} parent=51 // pred_check_branch
          %333 = sbr.rel (%p331) target = $region60
        $region59: #{tpu_custom_call.1} parent=51 // pred_region
          %334 = dma.done [#allocation6], 16
        $region60: #{tpu_custom_call.1} parent=51 // pred_fallthru
          _
        // Predicated region
        $region61: #{tpu_custom_call.1} parent=51 // pred_check
          %p335 = pneg %p111
        $region62: #{tpu_custom_call.1} parent=51 // pred_check_branch
          %337 = sbr.rel (%p335) target = $region64
        $region63: #{tpu_custom_call.1} parent=51 // pred_region
          %338 = dma.done [#allocation6], 256
        $region64: #{tpu_custom_call.1} parent=51 // pred_fallthru
          _
        // Predicated region
        $region65: #{tpu_custom_call.1} parent=51 // pred_check
          %p339 = pneg %p179
        $region66: #{tpu_custom_call.1} parent=51 // pred_check_branch
          %341 = sbr.rel (%p339) target = $region68
        $region67: #{tpu_custom_call.1} parent=51 // pred_region
          %342 = dma.done [#allocation9], 256
        $region68: #{tpu_custom_call.1} parent=51 // pred_fallthru
          _
        %s343 = sand.u32 %s35, 1
        %s344 = scalar_lea.sflag [#allocation3], %s343
        %s345 = sand.u32 %s35, 1
        %s346 = smul.addr %s345, 8
        %s347 = scalar_lea.vmem [#allocation2], %s346
        %p348 = pneg %p48
        %p349 = pneg %p45
        %p350 = pneg %p69
        %p351 = pneg %p66
        %p352 = pneg %p90
        %p353 = pneg %p87
        %p354 = pneg %p111
        %p355 = pneg %p108
        %p356 = pneg %p132
        %p357 = pneg %p129
        %p358 = scmp.lt.s32.totalorder %s27, 1
        %s359 = scalar_select %p358, %s27, 1
        %s360 = scalar_lea.vmem %s5, %s359
        %p361 = pneg %p158
        %p362 = pneg %p155
        %p363 = pneg %p179
        %p364 = pneg %p176
        %p365 = pneg %p200
        %p366 = pneg %p197
        %p367 = pneg %p226
        %p368 = pneg %p223
        %s369 = sand.u32 %s213, 1
        %s370 = scalar_lea.sflag [#allocation4], %s369
        %s371 = sand.u32 %s213, 1
        %s372 = smul.addr %s371, 8
        %s373 = scalar_lea.vmem [#allocation10], %s372
        %p374 = scmp.lt.s32.totalorder %s27, 1
        %s375 = scalar_select %p374, %s27, 1
        %s376 = scalar_lea.vmem %s5, %s375
        %v378 = vld [vmem:[%s326] sm:$0xff]
        %vm379 = vcmask 261120
        %v380 = vsel %vm379, %v378, 0.0
        %381 = vadd.xlane.f32.xlu0 %v380
        %v382 = vpop.xlane.xlu0 %381
        %v383 = vrcp.pop 32.0
        %v384 = vmul.f32 %v382, %v383
        %v385 = vsub.f32 %v378, %v384
        %v386 = vmul.f32 %v385, %v385
        %v387 = vsel %vm379, %v386, 0.0
        %388 = vadd.xlane.f32.xlu0 %v387
        %v389 = vpop.xlane.xlu0 %388
        %v390 = vrcp.pop 31.0
        %v391 = vmul.f32 %v389, %v390
        %v392 = vrsqrt.pop %v391
        %v393 = vmul.f32 %v391, %v392
        %vm394 = vcmp.eq.f32.partialorder %v391, inf
        %v395 = vsel %vm394, %v391, %v393
        %vm396 = vcmp.eq.f32.partialorder %v391, 0.0
        %v397 = vand.u32 %v391, 2147483648
        %v398 = vsel %vm396, %v397, %v395
        %v399 = vadd.f32 %v398, 1e-06
        %v400 = vrcp.pop %v399
        %v401 = vld [vmem:[%s1] sm:$0x1]
        %v403 = vlaneseq
        %v404 = vshrl.u32 %v403, 7
        %v405 = vsub.s32 0, %v404
        %v406 = vrot.slane %v401, %v405
        %v408 = vmul.f32 %v406, %v385
        %v409 = vmul.f32 %v408, %v400
        %v410 = vld [vmem:[#allocation5] sm:$0x1]
        %v412 = vlaneseq
        %v413 = vshrl.u32 %v412, 7
        %v414 = vsub.s32 0, %v413
        %v415 = vrot.slane %v410, %v414
        %v417 = vadd.f32 %v409, %v415
        %v418 = vpack.c.bf16 %v417, %v417
        %v419 = vld [vmem:[#allocation7] sm:$0xf]
        %v420 = vld [vmem:[#allocation7 + $0x4] sm:$0xf]
        %v421 = vld [vmem:[#allocation7 + $0x8] sm:$0xf]
        %v422 = vld [vmem:[#allocation7 + $0xc] sm:$0xf]
        %v423 = vld [vmem:[%s4] sm:$0x1]
        %v425 = vlaneseq
        %v426 = vshrl.u32 %v425, 7
        %v427 = vsub.s32 0, %v426
        %v428 = vrot.slane %v423, %v427
        %v434 = vunpack.c.l.b16 %v419
        %v435 = vunpack.c.l.b16 %v420
        %v436 = vunpack.c.l.b16 %v421
        %v437 = vunpack.c.l.b16 %v422
        %v438 = vpack.c.b16 %v435, %v434
        %v439 = vpack.c.b16 %v437, %v436
        %v443 = vsel %vm379, %v418, 0
        %445 = vmatprep.subr.bf16.mxu0 0
        %446 = vmatpush1.bf16.msra.mxu0 0
        %447 = vmatprep.subr.bf16.mxu0 0
        %448 = vmatpush1.bf16.msra.mxu0 0
        %449 = vmatprep.subr.bf16.mxu0 0
        %450 = vmatpush1.bf16.msra.mxu0 0
        %451 = vmatprep.subr.bf16.mxu0 0
        %452 = vmatpush1.bf16.msra.mxu0 0
        %453 = vmatprep.subr.bf16.mxu0 0
        %454 = vmatpush1.bf16.msra.mxu0 0
        %455 = vmatprep.subr.bf16.mxu0 0
        %456 = vmatpush1.bf16.msra.mxu0 0
        %457 = vmatprep.subr.bf16.mxu0 0
        %458 = vmatpush1.bf16.msra.mxu0 %v439
        %459 = vmatprep.subr.bf16.mxu0 0
        %460 = vmatpush1.bf16.msra.mxu0 %v438
        %461 = vmatprep.subr.bf16.mxu0 0
        %462 = vmatpush2.bf16.msra.mxu0 0
        %463 = vmatprep.subr.bf16.mxu0 0
        %464 = vmatpush2.bf16.msra.mxu0 0
        %465 = vmatprep.subr.bf16.mxu0 0
        %466 = vmatpush2.bf16.msra.mxu0 0
        %467 = vmatprep.subr.bf16.mxu0 0
        %468 = vmatpush2.bf16.msra.mxu0 0
        %469 = vmatprep.subr.bf16.mxu0 0
        %470 = vmatpush2.bf16.msra.mxu0 0
        %471 = vmatprep.subr.bf16.mxu0 0
        %472 = vmatpush2.bf16.msra.mxu0 0
        %473 = vmatprep.subr.bf16.mxu0 0
        %474 = vmatpush2.bf16.msra.mxu0 0
        %475 = vmatprep.subr.bf16.mxu0 0
        %476 = vmatpush2.bf16.msra.mxu0 0
        %477 = vmatprep.mubr.bf16.mxu0 0
        %478 = vmatmul.mubr.bf16.gmra.mxu0 %v443
        %v479 = vpop.f32.mrf.mxu0
        %v480 = vadd.f32 %v428, %v479
        %v481 = vpop.f32.mrf.mxu0
        %v482 = vpop.f32.mrf.mxu0
        %v483 = vpop.f32.mrf.mxu0
        %484 = vdwg.mxu0
        %v485 = vld [vmem:[%s376] sm:$0x1]
        %v487 = vlaneseq
        %v488 = vshrl.u32 %v487, 7
        %v489 = vsub.s32 0, %v488
        %v490 = vrot.slane %v485, %v489
        %v492 = vpack.c.bf16 %v480, %v480
        %494 = vrot.lane.b32.xlu0 %v492, 96
        %v495 = vpop.permute.xlu0 %494
        %vm496 = vcmask 64512
        %v498 = vsel %vm496, %v492, 0
        %v501 = vsel %vm496, %v495, 0
        %503 = vmatprep.subr.bf16.mxu0 0
        %504 = vmatpush1.bf16.xpose.msra.mxu0 0
        %505 = vmatprep.subr.bf16.mxu0 0
        %506 = vmatpush1.bf16.xpose.msra.mxu0 0
        %507 = vmatprep.subr.bf16.mxu0 0
        %508 = vmatpush1.bf16.xpose.msra.mxu0 0
        %509 = vmatprep.subr.bf16.mxu0 0
        %510 = vmatpush1.bf16.xpose.msra.mxu0 0
        %511 = vmatprep.subr.bf16.mxu0 0
        %512 = vmatpush1.bf16.xpose.msra.mxu0 0
        %513 = vmatprep.subr.bf16.mxu0 0
        %514 = vmatpush1.bf16.xpose.msra.mxu0 0
        %515 = vmatprep.subr.bf16.mxu0 0
        %516 = vmatpush1.bf16.xpose.msra.mxu0 0
        %517 = vmatprep.subr.bf16.mxu0 0
        %518 = vmatpush1.bf16.xpose.msra.mxu0 %v501
        %519 = vmatprep.subr.bf16.mxu0 0
        %520 = vmatpush2.bf16.xpose.msra.mxu0 0
        %521 = vmatprep.subr.bf16.mxu0 0
        %522 = vmatpush2.bf16.xpose.msra.mxu0 0
        %523 = vmatprep.subr.bf16.mxu0 0
        %524 = vmatpush2.bf16.xpose.msra.mxu0 0
        %525 = vmatprep.subr.bf16.mxu0 0
        %526 = vmatpush2.bf16.xpose.msra.mxu0 0
        %527 = vmatprep.subr.bf16.mxu0 0
        %528 = vmatpush2.bf16.xpose.msra.mxu0 0
        %529 = vmatprep.subr.bf16.mxu0 0
        %530 = vmatpush2.bf16.xpose.msra.mxu0 0
        %531 = vmatprep.subr.bf16.mxu0 0
        %532 = vmatpush2.bf16.xpose.msra.mxu0 0
        %533 = vmatprep.subr.bf16.mxu0 0
        %534 = vmatpush2.bf16.xpose.msra.mxu0 0
        %535 = vmatprep.mubr.bf16.mxu0 0
        %536 = vmatmul.mubr.bf16.gmra.mxu0 %v498
        %v537 = vpop.f32.mrf.mxu0
        %v538 = vadd.f32 %v490, %v537
        %v539 = vpop.f32.mrf.mxu0
        %v540 = vpop.f32.mrf.mxu0
        %v541 = vpop.f32.mrf.mxu0
        %542 = vdwg.mxu0
        %v543 = vsel %vm496, %v538, -inf
        %544 = vmax.xlane.f32.xlu0 %v543
        %v545 = vpop.xlane.xlu0 %544
        %v546 = vsub.f32 %v538, %v545
        %v547 = vmul.f32 %v546, 1.442695
        %v548 = vpow.pop %v547
        %v549 = vsel %vm496, %v548, 0.0
        %550 = vadd.xlane.f32.xlu0 %v549
        %v551 = vpop.xlane.xlu0 %550
        %v552 = vrcp.pop %v551
        %v553 = vmul.f32 %v548, %v552
        %v554 = vpack.c.bf16 %v553, %v553
        %555 = vrot.lane.b32.xlu0 %v492, 64
        %v556 = vpop.permute.xlu0 %555
        %v558 = vsel %vm496, %v554, 0
        %vm560 = vcmask 1043456
        %v562 = vsel %vm560, %v556, 0
        %564 = vmatprep.subr.bf16.mxu0 0
        %565 = vmatpush1.bf16.msra.mxu0 0
        %566 = vmatprep.subr.bf16.mxu0 0
        %567 = vmatpush1.bf16.msra.mxu0 0
        %568 = vmatprep.subr.bf16.mxu0 0
        %569 = vmatpush1.bf16.msra.mxu0 0
        %570 = vmatprep.subr.bf16.mxu0 0
        %571 = vmatpush1.bf16.msra.mxu0 0
        %572 = vmatprep.subr.bf16.mxu0 0
        %573 = vmatpush1.bf16.msra.mxu0 0
        %574 = vmatprep.subr.bf16.mxu0 0
        %575 = vmatpush1.bf16.msra.mxu0 0
        %576 = vmatprep.subr.bf16.mxu0 0
        %577 = vmatpush1.bf16.msra.mxu0 0
        %578 = vmatprep.subr.bf16.mxu0 0
        %579 = vmatpush1.bf16.msra.mxu0 %v562
        %580 = vmatprep.subr.bf16.mxu0 0
        %581 = vmatpush2.bf16.msra.mxu0 0
        %582 = vmatprep.subr.bf16.mxu0 0
        %583 = vmatpush2.bf16.msra.mxu0 0
        %584 = vmatprep.subr.bf16.mxu0 0
        %585 = vmatpush2.bf16.msra.mxu0 0
        %586 = vmatprep.subr.bf16.mxu0 0
        %587 = vmatpush2.bf16.msra.mxu0 0
        %588 = vmatprep.subr.bf16.mxu0 0
        %589 = vmatpush2.bf16.msra.mxu0 0
        %590 = vmatprep.subr.bf16.mxu0 0
        %591 = vmatpush2.bf16.msra.mxu0 0
        %592 = vmatprep.subr.bf16.mxu0 0
        %593 = vmatpush2.bf16.msra.mxu0 0
        %594 = vmatprep.subr.bf16.mxu0 0
        %595 = vmatpush2.bf16.msra.mxu0 0
        %596 = vmatprep.mubr.bf16.mxu0 0
        %597 = vmatmul.mubr.bf16.gmra.mxu0 %v558
        %v598 = vpop.f32.mrf.mxu0
        %v599 = vadd.f32 0.0, %v598
        %v600 = vpop.f32.mrf.mxu0
        %v601 = vpop.f32.mrf.mxu0
        %v602 = vpop.f32.mrf.mxu0
        %603 = vdwg.mxu0
        %604 = vrot.lane.b32.xlu0 %v492, 120
        %v605 = vpop.permute.xlu0 %604
        %606 = vrot.lane.b32.xlu0 %v492, 88
        %v607 = vpop.permute.xlu0 %606
        %v609 = vsel %vm496, %v605, 0
        %v612 = vsel %vm496, %v607, 0
        %614 = vmatprep.subr.bf16.mxu0 0
        %615 = vmatpush1.bf16.xpose.msra.mxu0 0
        %616 = vmatprep.subr.bf16.mxu0 0
        %617 = vmatpush1.bf16.xpose.msra.mxu0 0
        %618 = vmatprep.subr.bf16.mxu0 0
        %619 = vmatpush1.bf16.xpose.msra.mxu0 0
        %620 = vmatprep.subr.bf16.mxu0 0
        %621 = vmatpush1.bf16.xpose.msra.mxu0 0
        %622 = vmatprep.subr.bf16.mxu0 0
        %623 = vmatpush1.bf16.xpose.msra.mxu0 0
        %624 = vmatprep.subr.bf16.mxu0 0
        %625 = vmatpush1.bf16.xpose.msra.mxu0 0
        %626 = vmatprep.subr.bf16.mxu0 0
        %627 = vmatpush1.bf16.xpose.msra.mxu0 0
        %628 = vmatprep.subr.bf16.mxu0 0
        %629 = vmatpush1.bf16.xpose.msra.mxu0 %v612
        %630 = vmatprep.subr.bf16.mxu0 0
        %631 = vmatpush2.bf16.xpose.msra.mxu0 0
        %632 = vmatprep.subr.bf16.mxu0 0
        %633 = vmatpush2.bf16.xpose.msra.mxu0 0
        %634 = vmatprep.subr.bf16.mxu0 0
        %635 = vmatpush2.bf16.xpose.msra.mxu0 0
        %636 = vmatprep.subr.bf16.mxu0 0
        %637 = vmatpush2.bf16.xpose.msra.mxu0 0
        %638 = vmatprep.subr.bf16.mxu0 0
        %639 = vmatpush2.bf16.xpose.msra.mxu0 0
        %640 = vmatprep.subr.bf16.mxu0 0
        %641 = vmatpush2.bf16.xpose.msra.mxu0 0
        %642 = vmatprep.subr.bf16.mxu0 0
        %643 = vmatpush2.bf16.xpose.msra.mxu0 0
        %644 = vmatprep.subr.bf16.mxu0 0
        %645 = vmatpush2.bf16.xpose.msra.mxu0 0
        %646 = vmatprep.mubr.bf16.mxu0 0
        %647 = vmatmul.mubr.bf16.gmra.mxu0 %v609
        %v648 = vpop.f32.mrf.mxu0
        %v649 = vadd.f32 %v490, %v648
        %v650 = vpop.f32.mrf.mxu0
        %v651 = vpop.f32.mrf.mxu0
        %v652 = vpop.f32.mrf.mxu0
        %653 = vdwg.mxu0
        %v654 = vsel %vm496, %v649, -inf
        %655 = vmax.xlane.f32.xlu0 %v654
        %v656 = vpop.xlane.xlu0 %655
        %v657 = vsub.f32 %v649, %v656
        %v658 = vmul.f32 %v657, 1.442695
        %v659 = vpow.pop %v658
        %v660 = vsel %vm496, %v659, 0.0
        %661 = vadd.xlane.f32.xlu0 %v660
        %v662 = vpop.xlane.xlu0 %661
        %v663 = vrcp.pop %v662
        %v664 = vmul.f32 %v659, %v663
        %v665 = vpack.c.bf16 %v664, %v664
        %666 = vrot.lane.b32.xlu0 %v492, 56
        %v667 = vpop.permute.xlu0 %666
        %v669 = vsel %vm496, %v665, 0
        %v672 = vsel %vm560, %v667, 0
        %674 = vmatprep.subr.bf16.mxu0 0
        %675 = vmatpush1.bf16.msra.mxu0 0
        %676 = vmatprep.subr.bf16.mxu0 0
        %677 = vmatpush1.bf16.msra.mxu0 0
        %678 = vmatprep.subr.bf16.mxu0 0
        %679 = vmatpush1.bf16.msra.mxu0 0
        %680 = vmatprep.subr.bf16.mxu0 0
        %681 = vmatpush1.bf16.msra.mxu0 0
        %682 = vmatprep.subr.bf16.mxu0 0
        %683 = vmatpush1.bf16.msra.mxu0 0
        %684 = vmatprep.subr.bf16.mxu0 0
        %685 = vmatpush1.bf16.msra.mxu0 0
        %686 = vmatprep.subr.bf16.mxu0 0
        %687 = vmatpush1.bf16.msra.mxu0 0
        %688 = vmatprep.subr.bf16.mxu0 0
        %689 = vmatpush1.bf16.msra.mxu0 %v672
        %690 = vmatprep.subr.bf16.mxu0 0
        %691 = vmatpush2.bf16.msra.mxu0 0
        %692 = vmatprep.subr.bf16.mxu0 0
        %693 = vmatpush2.bf16.msra.mxu0 0
        %694 = vmatprep.subr.bf16.mxu0 0
        %695 = vmatpush2.bf16.msra.mxu0 0
        %696 = vmatprep.subr.bf16.mxu0 0
        %697 = vmatpush2.bf16.msra.mxu0 0
        %698 = vmatprep.subr.bf16.mxu0 0
        %699 = vmatpush2.bf16.msra.mxu0 0
        %700 = vmatprep.subr.bf16.mxu0 0
        %701 = vmatpush2.bf16.msra.mxu0 0
        %702 = vmatprep.subr.bf16.mxu0 0
        %703 = vmatpush2.bf16.msra.mxu0 0
        %704 = vmatprep.subr.bf16.mxu0 0
        %705 = vmatpush2.bf16.msra.mxu0 0
        %706 = vmatprep.mubr.bf16.mxu0 0
        %707 = vmatmul.mubr.bf16.gmra.mxu0 %v669
        %v708 = vpop.f32.mrf.mxu0
        %v709 = vadd.f32 0.0, %v708
        %v710 = vpop.f32.mrf.mxu0
        %v711 = vpop.f32.mrf.mxu0
        %v712 = vpop.f32.mrf.mxu0
        %713 = vdwg.mxu0
        %714 = vrot.lane.b32.xlu0 %v492, 112
        %v715 = vpop.permute.xlu0 %714
        %716 = vrot.lane.b32.xlu0 %v492, 80
        %v717 = vpop.permute.xlu0 %716
        %v719 = vsel %vm496, %v715, 0
        %v722 = vsel %vm496, %v717, 0
        %724 = vmatprep.subr.bf16.mxu0 0
        %725 = vmatpush1.bf16.xpose.msra.mxu0 0
        %726 = vmatprep.subr.bf16.mxu0 0
        %727 = vmatpush1.bf16.xpose.msra.mxu0 0
        %728 = vmatprep.subr.bf16.mxu0 0
        %729 = vmatpush1.bf16.xpose.msra.mxu0 0
        %730 = vmatprep.subr.bf16.mxu0 0
        %731 = vmatpush1.bf16.xpose.msra.mxu0 0
        %732 = vmatprep.subr.bf16.mxu0 0
        %733 = vmatpush1.bf16.xpose.msra.mxu0 0
        %734 = vmatprep.subr.bf16.mxu0 0
        %735 = vmatpush1.bf16.xpose.msra.mxu0 0
        %736 = vmatprep.subr.bf16.mxu0 0
        %737 = vmatpush1.bf16.xpose.msra.mxu0 0
        %738 = vmatprep.subr.bf16.mxu0 0
        %739 = vmatpush1.bf16.xpose.msra.mxu0 %v722
        %740 = vmatprep.subr.bf16.mxu0 0
        %741 = vmatpush2.bf16.xpose.msra.mxu0 0
        %742 = vmatprep.subr.bf16.mxu0 0
        %743 = vmatpush2.bf16.xpose.msra.mxu0 0
        %744 = vmatprep.subr.bf16.mxu0 0
        %745 = vmatpush2.bf16.xpose.msra.mxu0 0
        %746 = vmatprep.subr.bf16.mxu0 0
        %747 = vmatpush2.bf16.xpose.msra.mxu0 0
        %748 = vmatprep.subr.bf16.mxu0 0
        %749 = vmatpush2.bf16.xpose.msra.mxu0 0
        %750 = vmatprep.subr.bf16.mxu0 0
        %751 = vmatpush2.bf16.xpose.msra.mxu0 0
        %752 = vmatprep.subr.bf16.mxu0 0
        %753 = vmatpush2.bf16.xpose.msra.mxu0 0
        %754 = vmatprep.subr.bf16.mxu0 0
        %755 = vmatpush2.bf16.xpose.msra.mxu0 0
        %756 = vmatprep.mubr.bf16.mxu0 0
        %757 = vmatmul.mubr.bf16.gmra.mxu0 %v719
        %v758 = vpop.f32.mrf.mxu0
        %v759 = vadd.f32 %v490, %v758
        %v760 = vpop.f32.mrf.mxu0
        %v761 = vpop.f32.mrf.mxu0
        %v762 = vpop.f32.mrf.mxu0
        %763 = vdwg.mxu0
        %v764 = vsel %vm496, %v759, -inf
        %765 = vmax.xlane.f32.xlu0 %v764
        %v766 = vpop.xlane.xlu0 %765
        %v767 = vsub.f32 %v759, %v766
        %v768 = vmul.f32 %v767, 1.442695
        %v769 = vpow.pop %v768
        %v770 = vsel %vm496, %v769, 0.0
        %771 = vadd.xlane.f32.xlu0 %v770
        %v772 = vpop.xlane.xlu0 %771
        %v773 = vrcp.pop %v772
        %v774 = vmul.f32 %v769, %v773
        %v775 = vpack.c.bf16 %v774, %v774
        %776 = vrot.lane.b32.xlu0 %v492, 48
        %v777 = vpop.permute.xlu0 %776
        %v779 = vsel %vm496, %v775, 0
        %v782 = vsel %vm560, %v777, 0
        %784 = vmatprep.subr.bf16.mxu0 0
        %785 = vmatpush1.bf16.msra.mxu0 0
        %786 = vmatprep.subr.bf16.mxu0 0
        %787 = vmatpush1.bf16.msra.mxu0 0
        %788 = vmatprep.subr.bf16.mxu0 0
        %789 = vmatpush1.bf16.msra.mxu0 0
        %790 = vmatprep.subr.bf16.mxu0 0
        %791 = vmatpush1.bf16.msra.mxu0 0
        %792 = vmatprep.subr.bf16.mxu0 0
        %793 = vmatpush1.bf16.msra.mxu0 0
        %794 = vmatprep.subr.bf16.mxu0 0
        %795 = vmatpush1.bf16.msra.mxu0 0
        %796 = vmatprep.subr.bf16.mxu0 0
        %797 = vmatpush1.bf16.msra.mxu0 0
        %798 = vmatprep.subr.bf16.mxu0 0
        %799 = vmatpush1.bf16.msra.mxu0 %v782
        %800 = vmatprep.subr.bf16.mxu0 0
        %801 = vmatpush2.bf16.msra.mxu0 0
        %802 = vmatprep.subr.bf16.mxu0 0
        %803 = vmatpush2.bf16.msra.mxu0 0
        %804 = vmatprep.subr.bf16.mxu0 0
        %805 = vmatpush2.bf16.msra.mxu0 0
        %806 = vmatprep.subr.bf16.mxu0 0
        %807 = vmatpush2.bf16.msra.mxu0 0
        %808 = vmatprep.subr.bf16.mxu0 0
        %809 = vmatpush2.bf16.msra.mxu0 0
        %810 = vmatprep.subr.bf16.mxu0 0
        %811 = vmatpush2.bf16.msra.mxu0 0
        %812 = vmatprep.subr.bf16.mxu0 0
        %813 = vmatpush2.bf16.msra.mxu0 0
        %814 = vmatprep.subr.bf16.mxu0 0
        %815 = vmatpush2.bf16.msra.mxu0 0
        %816 = vmatprep.mubr.bf16.mxu0 0
        %817 = vmatmul.mubr.bf16.gmra.mxu0 %v779
        %v818 = vpop.f32.mrf.mxu0
        %v819 = vadd.f32 0.0, %v818
        %v820 = vpop.f32.mrf.mxu0
        %v821 = vpop.f32.mrf.mxu0
        %v822 = vpop.f32.mrf.mxu0
        %823 = vdwg.mxu0
        %824 = vrot.lane.b32.xlu0 %v492, 104
        %v825 = vpop.permute.xlu0 %824
        %826 = vrot.lane.b32.xlu0 %v492, 72
        %v827 = vpop.permute.xlu0 %826
        %v829 = vsel %vm496, %v825, 0
        %v832 = vsel %vm496, %v827, 0
        %834 = vmatprep.subr.bf16.mxu0 0
        %835 = vmatpush1.bf16.xpose.msra.mxu0 0
        %836 = vmatprep.subr.bf16.mxu0 0
        %837 = vmatpush1.bf16.xpose.msra.mxu0 0
        %838 = vmatprep.subr.bf16.mxu0 0
        %839 = vmatpush1.bf16.xpose.msra.mxu0 0
        %840 = vmatprep.subr.bf16.mxu0 0
        %841 = vmatpush1.bf16.xpose.msra.mxu0 0
        %842 = vmatprep.subr.bf16.mxu0 0
        %843 = vmatpush1.bf16.xpose.msra.mxu0 0
        %844 = vmatprep.subr.bf16.mxu0 0
        %845 = vmatpush1.bf16.xpose.msra.mxu0 0
        %846 = vmatprep.subr.bf16.mxu0 0
        %847 = vmatpush1.bf16.xpose.msra.mxu0 0
        %848 = vmatprep.subr.bf16.mxu0 0
        %849 = vmatpush1.bf16.xpose.msra.mxu0 %v832
        %850 = vmatprep.subr.bf16.mxu0 0
        %851 = vmatpush2.bf16.xpose.msra.mxu0 0
        %852 = vmatprep.subr.bf16.mxu0 0
        %853 = vmatpush2.bf16.xpose.msra.mxu0 0
        %854 = vmatprep.subr.bf16.mxu0 0
        %855 = vmatpush2.bf16.xpose.msra.mxu0 0
        %856 = vmatprep.subr.bf16.mxu0 0
        %857 = vmatpush2.bf16.xpose.msra.mxu0 0
        %858 = vmatprep.subr.bf16.mxu0 0
        %859 = vmatpush2.bf16.xpose.msra.mxu0 0
        %860 = vmatprep.subr.bf16.mxu0 0
        %861 = vmatpush2.bf16.xpose.msra.mxu0 0
        %862 = vmatprep.subr.bf16.mxu0 0
        %863 = vmatpush2.bf16.xpose.msra.mxu0 0
        %864 = vmatprep.subr.bf16.mxu0 0
        %865 = vmatpush2.bf16.xpose.msra.mxu0 0
        %866 = vmatprep.mubr.bf16.mxu0 0
        %867 = vmatmul.mubr.bf16.gmra.mxu0 %v829
        %v868 = vpop.f32.mrf.mxu0
        %v869 = vadd.f32 %v490, %v868
        %v870 = vpop.f32.mrf.mxu0
        %v871 = vpop.f32.mrf.mxu0
        %v872 = vpop.f32.mrf.mxu0
        %873 = vdwg.mxu0
        %v874 = vsel %vm496, %v869, -inf
        %875 = vmax.xlane.f32.xlu0 %v874
        %v876 = vpop.xlane.xlu0 %875
        %v877 = vsub.f32 %v869, %v876
        %v878 = vmul.f32 %v877, 1.442695
        %v879 = vpow.pop %v878
        %v880 = vsel %vm496, %v879, 0.0
        %881 = vadd.xlane.f32.xlu0 %v880
        %v882 = vpop.xlane.xlu0 %881
        %v883 = vrcp.pop %v882
        %v884 = vmul.f32 %v879, %v883
        %v885 = vpack.c.bf16 %v884, %v884
        %886 = vrot.lane.b32.xlu0 %v492, 40
        %v887 = vpop.permute.xlu0 %886
        %v889 = vsel %vm496, %v885, 0
        %v892 = vsel %vm560, %v887, 0
        %894 = vmatprep.subr.bf16.mxu0 0
        %895 = vmatpush1.bf16.msra.mxu0 0
        %896 = vmatprep.subr.bf16.mxu0 0
        %897 = vmatpush1.bf16.msra.mxu0 0
        %898 = vmatprep.subr.bf16.mxu0 0
        %899 = vmatpush1.bf16.msra.mxu0 0
        %900 = vmatprep.subr.bf16.mxu0 0
        %901 = vmatpush1.bf16.msra.mxu0 0
        %902 = vmatprep.subr.bf16.mxu0 0
        %903 = vmatpush1.bf16.msra.mxu0 0
        %904 = vmatprep.subr.bf16.mxu0 0
        %905 = vmatpush1.bf16.msra.mxu0 0
        %906 = vmatprep.subr.bf16.mxu0 0
        %907 = vmatpush1.bf16.msra.mxu0 0
        %908 = vmatprep.subr.bf16.mxu0 0
        %909 = vmatpush1.bf16.msra.mxu0 %v892
        %910 = vmatprep.subr.bf16.mxu0 0
        %911 = vmatpush2.bf16.msra.mxu0 0
        %912 = vmatprep.subr.bf16.mxu0 0
        %913 = vmatpush2.bf16.msra.mxu0 0
        %914 = vmatprep.subr.bf16.mxu0 0
        %915 = vmatpush2.bf16.msra.mxu0 0
        %916 = vmatprep.subr.bf16.mxu0 0
        %917 = vmatpush2.bf16.msra.mxu0 0
        %918 = vmatprep.subr.bf16.mxu0 0
        %919 = vmatpush2.bf16.msra.mxu0 0
        %920 = vmatprep.subr.bf16.mxu0 0
        %921 = vmatpush2.bf16.msra.mxu0 0
        %922 = vmatprep.subr.bf16.mxu0 0
        %923 = vmatpush2.bf16.msra.mxu0 0
        %924 = vmatprep.subr.bf16.mxu0 0
        %925 = vmatpush2.bf16.msra.mxu0 0
        %926 = vmatprep.mubr.bf16.mxu0 0
        %927 = vmatmul.mubr.bf16.gmra.mxu0 %v889
        %v928 = vpop.f32.mrf.mxu0
        %v929 = vadd.f32 0.0, %v928
        %v930 = vpop.f32.mrf.mxu0
        %v931 = vpop.f32.mrf.mxu0
        %v932 = vpop.f32.mrf.mxu0
        %933 = vdwg.mxu0
        %v934 = vpack.c.bf16 %v599, %v599
        %v935 = vld [vmem:[#allocation8] sm:$0xf]
        %v936 = vpack.c.bf16 %v709, %v709
        %v937 = vld [vmem:[#allocation8 + $0x4] sm:$0xf]
        %v939 = vsel %vm496, %v936, 0
        %v942 = vsel %vm560, %v937, 0
        %944 = vmatprep.subr.bf16.mxu0 0
        %945 = vmatpush1.bf16.msra.mxu0 0
        %946 = vmatprep.subr.bf16.mxu0 0
        %947 = vmatpush1.bf16.msra.mxu0 0
        %948 = vmatprep.subr.bf16.mxu0 0
        %949 = vmatpush1.bf16.msra.mxu0 0
        %950 = vmatprep.subr.bf16.mxu0 0
        %951 = vmatpush1.bf16.msra.mxu0 0
        %952 = vmatprep.subr.bf16.mxu0 0
        %953 = vmatpush1.bf16.msra.mxu0 0
        %954 = vmatprep.subr.bf16.mxu0 0
        %955 = vmatpush1.bf16.msra.mxu0 0
        %956 = vmatprep.subr.bf16.mxu0 0
        %957 = vmatpush1.bf16.msra.mxu0 0
        %958 = vmatprep.subr.bf16.mxu0 0
        %959 = vmatpush1.bf16.msra.mxu0 %v942
        %960 = vmatprep.subr.bf16.mxu0 0
        %961 = vmatpush2.bf16.msra.mxu0 0
        %962 = vmatprep.subr.bf16.mxu0 0
        %963 = vmatpush2.bf16.msra.mxu0 0
        %964 = vmatprep.subr.bf16.mxu0 0
        %965 = vmatpush2.bf16.msra.mxu0 0
        %966 = vmatprep.subr.bf16.mxu0 0
        %967 = vmatpush2.bf16.msra.mxu0 0
        %968 = vmatprep.subr.bf16.mxu0 0
        %969 = vmatpush2.bf16.msra.mxu0 0
        %970 = vmatprep.subr.bf16.mxu0 0
        %971 = vmatpush2.bf16.msra.mxu0 0
        %972 = vmatprep.subr.bf16.mxu0 0
        %973 = vmatpush2.bf16.msra.mxu0 0
        %974 = vmatprep.subr.bf16.mxu0 0
        %975 = vmatpush2.bf16.msra.mxu0 0
        %976 = vmatprep.mubr.bf16.mxu0 0
        %977 = vmatmul.mubr.bf16.gmra.mxu0 %v939
        %v978 = vpop.f32.mrf.mxu0
        %v979 = vadd.f32 0.0, %v978
        %v980 = vpop.f32.mrf.mxu0
        %v981 = vpop.f32.mrf.mxu0
        %v982 = vpop.f32.mrf.mxu0
        %983 = vdwg.mxu0
        %v985 = vsel %vm496, %v934, 0
        %v988 = vsel %vm560, %v935, 0
        %990 = vmatprep.subr.bf16.mxu0 0
        %991 = vmatpush1.bf16.msra.mxu0 0
        %992 = vmatprep.subr.bf16.mxu0 0
        %993 = vmatpush1.bf16.msra.mxu0 0
        %994 = vmatprep.subr.bf16.mxu0 0
        %995 = vmatpush1.bf16.msra.mxu0 0
        %996 = vmatprep.subr.bf16.mxu0 0
        %997 = vmatpush1.bf16.msra.mxu0 0
        %998 = vmatprep.subr.bf16.mxu0 0
        %999 = vmatpush1.bf16.msra.mxu0 0
        %1000 = vmatprep.subr.bf16.mxu0 0
        %1001 = vmatpush1.bf16.msra.mxu0 0
        %1002 = vmatprep.subr.bf16.mxu0 0
        %1003 = vmatpush1.bf16.msra.mxu0 0
        %1004 = vmatprep.subr.bf16.mxu0 0
        %1005 = vmatpush1.bf16.msra.mxu0 %v988
        %1006 = vmatprep.subr.bf16.mxu0 0
        %1007 = vmatpush2.bf16.msra.mxu0 0
        %1008 = vmatprep.subr.bf16.mxu0 0
        %1009 = vmatpush2.bf16.msra.mxu0 0
        %1010 = vmatprep.subr.bf16.mxu0 0
        %1011 = vmatpush2.bf16.msra.mxu0 0
        %1012 = vmatprep.subr.bf16.mxu0 0
        %1013 = vmatpush2.bf16.msra.mxu0 0
        %1014 = vmatprep.subr.bf16.mxu0 0
        %1015 = vmatpush2.bf16.msra.mxu0 0
        %1016 = vmatprep.subr.bf16.mxu0 0
        %1017 = vmatpush2.bf16.msra.mxu0 0
        %1018 = vmatprep.subr.bf16.mxu0 0
        %1019 = vmatpush2.bf16.msra.mxu0 0
        %1020 = vmatprep.subr.bf16.mxu0 0
        %1021 = vmatpush2.bf16.msra.mxu0 0
        %1022 = vmatprep.mubr.bf16.mxu0 0
        %1023 = vmatmul.mubr.bf16.gmra.mxu0 %v985
        %v1024 = vpop.f32.mrf.mxu0
        %v1025 = vadd.f32 %v979, %v1024
        %v1026 = vpop.f32.mrf.mxu0
        %v1027 = vpop.f32.mrf.mxu0
        %v1028 = vpop.f32.mrf.mxu0
        %1029 = vdwg.mxu0
        %v1030 = vpack.c.bf16 %v819, %v819
        %v1031 = vld [vmem:[#allocation8 + $0x8] sm:$0xf]
        %v1033 = vsel %vm496, %v1030, 0
        %v1036 = vsel %vm560, %v1031, 0
        %1038 = vmatprep.subr.bf16.mxu0 0
        %1039 = vmatpush1.bf16.msra.mxu0 0
        %1040 = vmatprep.subr.bf16.mxu0 0
        %1041 = vmatpush1.bf16.msra.mxu0 0
        %1042 = vmatprep.subr.bf16.mxu0 0
        %1043 = vmatpush1.bf16.msra.mxu0 0
        %1044 = vmatprep.subr.bf16.mxu0 0
        %1045 = vmatpush1.bf16.msra.mxu0 0
        %1046 = vmatprep.subr.bf16.mxu0 0
        %1047 = vmatpush1.bf16.msra.mxu0 0
        %1048 = vmatprep.subr.bf16.mxu0 0
        %1049 = vmatpush1.bf16.msra.mxu0 0
        %1050 = vmatprep.subr.bf16.mxu0 0
        %1051 = vmatpush1.bf16.msra.mxu0 0
        %1052 = vmatprep.subr.bf16.mxu0 0
        %1053 = vmatpush1.bf16.msra.mxu0 %v1036
        %1054 = vmatprep.subr.bf16.mxu0 0
        %1055 = vmatpush2.bf16.msra.mxu0 0
        %1056 = vmatprep.subr.bf16.mxu0 0
        %1057 = vmatpush2.bf16.msra.mxu0 0
        %1058 = vmatprep.subr.bf16.mxu0 0
        %1059 = vmatpush2.bf16.msra.mxu0 0
        %1060 = vmatprep.subr.bf16.mxu0 0
        %1061 = vmatpush2.bf16.msra.mxu0 0
        %1062 = vmatprep.subr.bf16.mxu0 0
        %1063 = vmatpush2.bf16.msra.mxu0 0
        %1064 = vmatprep.subr.bf16.mxu0 0
        %1065 = vmatpush2.bf16.msra.mxu0 0
        %1066 = vmatprep.subr.bf16.mxu0 0
        %1067 = vmatpush2.bf16.msra.mxu0 0
        %1068 = vmatprep.subr.bf16.mxu0 0
        %1069 = vmatpush2.bf16.msra.mxu0 0
        %1070 = vmatprep.mubr.bf16.mxu0 0
        %1071 = vmatmul.mubr.bf16.gmra.mxu0 %v1033
        %v1072 = vpop.f32.mrf.mxu0
        %v1073 = vadd.f32 0.0, %v1072
        %v1074 = vpop.f32.mrf.mxu0
        %v1075 = vpop.f32.mrf.mxu0
        %v1076 = vpop.f32.mrf.mxu0
        %1077 = vdwg.mxu0
        %v1078 = vadd.f32 %v1025, %v1073
        %v1079 = vpack.c.bf16 %v929, %v929
        %v1080 = vld [vmem:[#allocation8 + $0xc] sm:$0xf]
        %v1082 = vsel %vm496, %v1079, 0
        %v1085 = vsel %vm560, %v1080, 0
        %1087 = vmatprep.subr.bf16.mxu0 0
        %1088 = vmatpush1.bf16.msra.mxu0 0
        %1089 = vmatprep.subr.bf16.mxu0 0
        %1090 = vmatpush1.bf16.msra.mxu0 0
        %1091 = vmatprep.subr.bf16.mxu0 0
        %1092 = vmatpush1.bf16.msra.mxu0 0
        %1093 = vmatprep.subr.bf16.mxu0 0
        %1094 = vmatpush1.bf16.msra.mxu0 0
        %1095 = vmatprep.subr.bf16.mxu0 0
        %1096 = vmatpush1.bf16.msra.mxu0 0
        %1097 = vmatprep.subr.bf16.mxu0 0
        %1098 = vmatpush1.bf16.msra.mxu0 0
        %1099 = vmatprep.subr.bf16.mxu0 0
        %1100 = vmatpush1.bf16.msra.mxu0 0
        %1101 = vmatprep.subr.bf16.mxu0 0
        %1102 = vmatpush1.bf16.msra.mxu0 %v1085
        %1103 = vmatprep.subr.bf16.mxu0 0
        %1104 = vmatpush2.bf16.msra.mxu0 0
        %1105 = vmatprep.subr.bf16.mxu0 0
        %1106 = vmatpush2.bf16.msra.mxu0 0
        %1107 = vmatprep.subr.bf16.mxu0 0
        %1108 = vmatpush2.bf16.msra.mxu0 0
        %1109 = vmatprep.subr.bf16.mxu0 0
        %1110 = vmatpush2.bf16.msra.mxu0 0
        %1111 = vmatprep.subr.bf16.mxu0 0
        %1112 = vmatpush2.bf16.msra.mxu0 0
        %1113 = vmatprep.subr.bf16.mxu0 0
        %1114 = vmatpush2.bf16.msra.mxu0 0
        %1115 = vmatprep.subr.bf16.mxu0 0
        %1116 = vmatpush2.bf16.msra.mxu0 0
        %1117 = vmatprep.subr.bf16.mxu0 0
        %1118 = vmatpush2.bf16.msra.mxu0 0
        %1119 = vmatprep.mubr.bf16.mxu0 0
        %1120 = vmatmul.mubr.bf16.gmra.mxu0 %v1082
        %v1121 = vpop.f32.mrf.mxu0
        %v1122 = vadd.f32 0.0, %v1121
        %v1123 = vpop.f32.mrf.mxu0
        %v1124 = vpop.f32.mrf.mxu0
        %v1125 = vpop.f32.mrf.mxu0
        %1126 = vdwg.mxu0
        %v1127 = vadd.f32 %v1078, %v1122
        %v1128 = vadd.f32 %v378, %v1127
        %v1129 = vld [vmem:[%s7] sm:$0x1]
        %v1131 = vlaneseq
        %v1132 = vshrl.u32 %v1131, 7
        %v1133 = vsub.s32 0, %v1132
        %v1134 = vrot.slane %v1129, %v1133
        %v1136 = vadd.f32 %v1128, %v1134
        %1137 = vst.msk [vmem:[%s373] sm:$0xff] %vm379, %v1136
        %s1138 = sand.u32 %s213, 1
        %s1139 = scalar_lea.sflag [#allocation4], %s1138
        %s1140 = sand.u32 %s213, 1
        %s1141 = smul.addr %s1140, 8
        %s1142 = scalar_lea.vmem [#allocation10], %s1141
        // Predicated region
        $region69: #{tpu_custom_call.1} parent=51 // pred_check
          %p1143 = pneg %p223
        $region70: #{tpu_custom_call.1} parent=51 // pred_check_branch
          %1145 = sbr.rel (%p1143) target = $region72
        $region71: #{tpu_custom_call.1} parent=51 // pred_region
          %s1147 = ssub.s32 128, 128
          %1148 = vsyncadd %s1139, %s1147
          %s1149 = smul.addr %s27, 128
          %s1150 = scalar_lea.hbm %s8, %s1149
          %s1152 = sshll.u32 %s1142, 4
          %s1153 = int_to_ptr.vmem [resolvable:$true] %s1152
          %1155 = dma.vmem_to_hbm [thread:$0]  %s1153, 128, %s1150, %s1139
        $region72: #{tpu_custom_call.1} parent=51 // pred_fallthru
          _
      $region52: #{tpu_custom_call.1} parent=5 // pred_fallthru
        _
      %p1156 = scmp.le.s32.totalorder 2, %s22
      // Predicated region
      $region73: #{tpu_custom_call.1} parent=5 // pred_check
        %p1157 = pneg %p1156
      $region74: #{tpu_custom_call.1} parent=5 // pred_check_branch
        %1159 = sbr.rel (%p1157) target = $region76
      $region75: #{tpu_custom_call.1} parent=5 // pred_region
        %s1160 = ssub.s32 %s22, 2
        // Predicated region
        $region77: #{tpu_custom_call.1} parent=75 // pred_check
          %p1161 = pneg %p229
        $region78: #{tpu_custom_call.1} parent=75 // pred_check_branch
          %1163 = sbr.rel (%p1161) target = $region80
        $region79: #{tpu_custom_call.1} parent=75 // pred_region
          %s1164 = sand.u32 %s214, 1
          %s1165 = scalar_lea.sflag [#allocation4], %s1164
          %s1166 = sand.u32 %s214, 1
          %s1167 = smul.addr %s1166, 8
          %s1168 = scalar_lea.vmem [#allocation10], %s1167
          %1169 = dma.done %s1165, 128
        $region80: #{tpu_custom_call.1} parent=75 // pred_fallthru
          _
      $region76: #{tpu_custom_call.1} parent=5 // pred_fallthru
        _
    $region6: #{tpu_custom_call.1} parent=1 // loop_footer
      %s26 = sadd.s32 1, %s22
    $region7: #{tpu_custom_call.1} parent=1 // loop_footer_branch
      %21 = sbr.rel target = $region3
    $region8: #{tpu_custom_call.1} parent=1 // loop_exit
      _
    %1170 = vsyncpa [#allocation3], 1
    %s1171 = scalar_lea.sflag [#allocation3], 1
    %1172 = vsyncpa %s1171, 1
    %1173 = vsyncpa [#allocation6], 1
    %1174 = vsyncpa [#allocation9], 1
    %1175 = vsyncpa [#allocation4], 1
    %s1176 = scalar_lea.sflag [#allocation4], 1
    %1177 = vsyncpa %s1176, 1

</llo_original>
